<compile_context>
chip_gen: v6e
topology: v6e:2x2x1
jax: 0.10.0
libtpu: 0.0.40
codegen_flags: <defaults>
</compile_context>

<pallas_src>
import functools
import math

import jax
import jax.numpy as jnp
from jax import lax
from jax.experimental import pallas as pl
from jax.experimental.pallas import tpu as pltpu


# ----------------------------------------------------------------------------
# Fused kernel: (diag MLP, full MLP, L, C) for a tile of `bb` batches.
# ----------------------------------------------------------------------------
def _mlp3(x_bf16, w1_ref, b1_ref, w2_ref, b2_ref, w3_ref, b3_ref):
    """3-layer ReLU MLP; bf16 matmul operands, f32 accumulation."""
    h = jnp.dot(x_bf16, w1_ref[...], preferred_element_type=jnp.float32) + b1_ref[...]
    h = jnp.maximum(h, 0.0).astype(jnp.bfloat16)
    h = jnp.dot(h, w2_ref[...], preferred_element_type=jnp.float32) + b2_ref[...]
    h = jnp.maximum(h, 0.0).astype(jnp.bfloat16)
    return jnp.dot(h, w3_ref[...], preferred_element_type=jnp.float32) + b3_ref[...]


def _encoder_cov_kernel(x_ref,
                        dw1, db1, dw2, db2, dw3, db3,
                        fw1, fb1, fw2, fb2, fw3, fb3,
                        l_ref, c_ref, *, z_dim, eps):
    bb, n, xd = x_ref.shape
    gz = bb * z_dim

    # ---- both MLPs on the batch tile (x cast to bf16 in-kernel, f32 accum) ----
    x = x_ref[...].astype(jnp.bfloat16).reshape(bb * n, xd)
    d = _mlp3(x, dw1, db1, dw2, db2, dw3, db3)            # (bb*N, Z) f32
    m = _mlp3(x, fw1, fb1, fw2, fb2, fw3, fb3)            # (bb*N, Z) f32

    # ---- reorganize to one length-N row per (batch, z) slice ----
    d = jnp.transpose(d.reshape(bb, n, z_dim), (0, 2, 1)).reshape(gz, n)
    m = jnp.transpose(m.reshape(bb, n, z_dim), (0, 2, 1)).reshape(gz, n)
    e = jnp.exp(d)                                         # (gz, N)

    row = lax.broadcasted_iota(jnp.int32, (n, n), 0)
    col = lax.broadcasted_iota(jnp.int32, (n, n), 1)
    diag = row == col
    lower = row > col                                      # strictly-lower mask

    # ---- L = diag(exp(d)) + tril(m m^T, -1) ----
    outer = m[:, :, None] * m[:, None, :]                  # (gz, N, N)
    L = jnp.where(diag, e[:, :, None], jnp.where(lower, outer, 0.0))
    l_ref[...] = L

    # ---- C = L L^T + eps*I via the exact closed form (O(N^2), no MXU) ----
    msq = m * m
    # exclusive prefix sum along N: s[g, i] = sum_{k < i} m[g, k]^2
    s = jnp.sum(jnp.where(lower, msq[:, None, :], 0.0), axis=-1)       # (gz, N)
    es = e + s
    off = outer * jnp.where(lower, es[:, None, :], es[:, :, None])     # m_i m_j (e_min + s_min)
    c_diag = e * e + msq * s + jnp.float32(eps)                        # e_i^2 + m_i^2 s_i + eps
    c_ref[...] = jnp.where(diag, c_diag[:, :, None], off)


# ----------------------------------------------------------------------------
# VMEM-aware sizing helpers
# ----------------------------------------------------------------------------
def _vmem_limit_bytes():
    cap = 64 * 1024 * 1024
    try:
        cap = int(getattr(pltpu.get_tpu_info(), "vmem_capacity_bytes", cap))
    except Exception:
        pass
    # 32 MiB on 64-MiB-VMEM parts (v7x), 64 MiB on 128-MiB parts (v5e/v6e).
    return int(min(max(cap // 2, 32 * 1024 * 1024), 64 * 1024 * 1024))


def _choose_batch_tile(B, N, xd, z_dim, inter, budget_bytes):
    """Largest divisor of B whose per-step VMEM footprint (pipelined blocks +
    in-kernel temporaries) fits the budget, capped at B//2 so the 'parallel'
    grid axis keeps >= 2 steps for v7x megacore sharding."""
    f32, bf16 = 4, 2
    io = 2 * (N * xd * f32 + 2 * z_dim * N * N * f32)          # double-buffered x, L, C blocks
    mlp_tmp = N * (xd * bf16 + 4 * inter * (f32 + bf16) + 2 * z_dim * f32)
    cov_tmp = 6 * z_dim * N * N * f32 + 8 * z_dim * N * f32    # outer/L/off/C/tmp + vectors
    per_b = io + mlp_tmp + cov_tmp
    fixed = (2 * (2 * (xd * inter + inter * inter + inter * z_dim) * bf16
                  + 2 * (2 * inter + z_dim) * f32)              # weights + biases (x2 buffers)
             + 4 * N * N * f32)                                 # iota masks
    cap = max(1, int((budget_bytes - fixed) // max(per_b, 1)))
    if B >= 2:
        cap = min(cap, B // 2)
    bb = 1
    for d in range(min(cap, B), 0, -1):
        if B % d == 0:
            bb = d
            break
    return bb


# ----------------------------------------------------------------------------
# Parameter handling (PyTorch-style init; one-time bf16 weight prep)
# ----------------------------------------------------------------------------
def init_linear(key, fan_in, fan_out):
    k1, k2 = jax.random.split(key)
    bound = 1.0 / math.sqrt(fan_in)
    w = jax.random.uniform(k1, (fan_in, fan_out), jnp.float32, -bound, bound)
    b = jax.random.uniform(k2, (1, fan_out), jnp.float32, -bound, bound)
    return w, b


def init_mlp(key, in_dim, out_dim, inter_dim):
    k1, k2, k3 = jax.random.split(key, 3)
    w1, b1 = init_linear(k1, in_dim, inter_dim)
    w2, b2 = init_linear(k2, inter_dim, inter_dim)
    w3, b3 = init_linear(k3, inter_dim, out_dim)
    return (w1, b1, w2, b2, w3, b3)


def prepare_params(diag_params, full_params):
    """One-time prep: cast matmul weights to bf16 (MXU-native), keep biases f32.
    Do this at init time, not per forward call."""
    def prep(p):
        w1, b1, w2, b2, w3, b3 = p
        return (w1.astype(jnp.bfloat16), b1.astype(jnp.float32),
                w2.astype(jnp.bfloat16), b2.astype(jnp.float32),
                w3.astype(jnp.bfloat16), b3.astype(jnp.float32))
    return prep(diag_params) + prep(full_params)


# ----------------------------------------------------------------------------
# Full forward pass
# ----------------------------------------------------------------------------
def encoder_covariance_forward(x, prepared_params, eps=1e-3):
    """x: (B, N, x_dim) f32 -> (L, C), each (B, z_dim, N, N) f32."""
    B, N, xd = x.shape
    (dw1, db1, dw2, db2, dw3, db3,
     fw1, fb1, fw2, fb2, fw3, fb3) = prepared_params
    inter = dw1.shape[1]
    z_dim = dw3.shape[1]
    G = B * z_dim

    vmem_limit = _vmem_limit_bytes()
    bb = _choose_batch_tile(B, N, xd, z_dim, inter,
                            budget_bytes=(vmem_limit * 3) // 5)
    grid = (B // bb,)

    x_map = lambda i: (i, 0, 0)
    w_map = lambda i: (0, 0)
    out_map = lambda i: (i, 0, 0)

    kernel = functools.partial(_encoder_cov_kernel, z_dim=z_dim, eps=float(eps))

    mlp_flops = 2 * 2 * B * N * (xd * inter + inter * inter + inter * z_dim)
    cov_flops = 12 * G * N * N
    bytes_accessed = (x.size * 4
                      + 2 * 2 * (xd * inter + inter * inter + inter * z_dim)
                      + 2 * G * N * N * 4)

    weights = (dw1, db1, dw2, db2, dw3, db3, fw1, fb1, fw2, fb2, fw3, fb3)

    L, C = pl.pallas_call(
        kernel,
        grid=grid,
        in_specs=[pl.BlockSpec((bb, N, xd), x_map)]
                 + [pl.BlockSpec(w.shape, w_map) for w in weights],
        out_specs=[
            pl.BlockSpec((bb * z_dim, N, N), out_map),
            pl.BlockSpec((bb * z_dim, N, N), out_map),
        ],
        out_shape=[
            jax.ShapeDtypeStruct((G, N, N), jnp.float32),
            jax.ShapeDtypeStruct((G, N, N), jnp.float32),
        ],
        compiler_params=pltpu.CompilerParams(
            dimension_semantics=("parallel",),
            vmem_limit_bytes=vmem_limit,
        ),
        cost_estimate=pl.CostEstimate(
            flops=int(mlp_flops + cov_flops),
            transcendentals=int(G * N),
            bytes_accessed=int(bytes_accessed)),
    )(x, *weights)

    return L.reshape(B, z_dim, N, N), C.reshape(B, z_dim, N, N)


# ----------------------------------------------------------------------------
# Plain-JAX references for verification
# ----------------------------------------------------------------------------
def ref_forward(x, diag_params, full_params, eps, matmul_dtype=jnp.float32):
    def mlp(xx, p):
        w1, b1, w2, b2, w3, b3 = p

        def mm(a, w):
            return jnp.dot(a.astype(matmul_dtype), w.astype(matmul_dtype),
                           preferred_element_type=jnp.float32)

        h = jnp.maximum(mm(xx, w1) + b1, 0.0)
        h = jnp.maximum(mm(h, w2) + b2, 0.0)
        return mm(h, w3) + b3

    B, N, _ = x.shape
    D = jnp.exp(jnp.swapaxes(mlp(x, diag_params), -1, -2))        # (B, Z, N)
    Dm = D[..., :, None] * jnp.eye(N, dtype=jnp.float32)          # diag_embed
    M = jnp.swapaxes(mlp(x, full_params), -1, -2)                 # (B, Z, N)
    Lr = Dm + jnp.tril(M[..., :, None] * M[..., None, :], -1)
    Cr = Lr @ jnp.swapaxes(Lr, -1, -2) + eps * jnp.eye(N, dtype=jnp.float32)
    return Lr, Cr


if __name__ == "__main__":
    B, N, X_DIM, Z_DIM, INTER = 2, 8, 4, 3, 32
    EPS = 1e-3

    key = jax.random.PRNGKey(0)
    kx, kd, kf = jax.random.split(key, 3)

    x = jax.random.normal(kx, (B, N, X_DIM), jnp.float32)
    diag_params = init_mlp(kd, X_DIM, Z_DIM, INTER)
    full_params = init_mlp(kf, X_DIM, Z_DIM, INTER)

    params = prepare_params(diag_params, full_params)   # one-time bf16 weight prep

    fwd = jax.jit(functools.partial(encoder_covariance_forward, eps=EPS))
    L, C = jax.block_until_ready(fwd(x, params))
    assert L.shape == (B, Z_DIM, N, N) and C.shape == (B, Z_DIM, N, N)

    # Tight check against a reference using the same bf16 matmul operands / f32 accum.
    Lb, Cb = ref_forward(x, diag_params, full_params, EPS, matmul_dtype=jnp.bfloat16)
    assert jnp.allclose(L, Lb, rtol=2e-2, atol=2e-2), "L mismatch vs bf16 reference"
    assert jnp.allclose(C, Cb, rtol=2e-2, atol=2e-2), "C mismatch vs bf16 reference"

    # Sanity check against the full-f32 (PyTorch-semantics) reference.
    Lf, Cf = ref_forward(x, diag_params, full_params, EPS, matmul_dtype=jnp.float32)
    assert jnp.allclose(L, Lf, rtol=2e-1, atol=2e-1), "L mismatch vs f32 reference"
    assert jnp.allclose(C, Cf, rtol=2e-1, atol=2e-1), "C mismatch vs f32 reference"

    print("KERNEL_OK")
</pallas_src>

<mosaic_0001>
module attributes {stable_mosaic.version = 11 : i64} {
  func.func @_encoder_cov_kernel(%arg0: i32, %arg1: memref<1x8x4xf32, #tpu.memory_space<vmem>>, %arg2: memref<4x32xbf16, #tpu.memory_space<vmem>>, %arg3: memref<1x32xf32, #tpu.memory_space<vmem>>, %arg4: memref<32x32xbf16, #tpu.memory_space<vmem>>, %arg5: memref<1x32xf32, #tpu.memory_space<vmem>>, %arg6: memref<32x3xbf16, #tpu.memory_space<vmem>>, %arg7: memref<1x3xf32, #tpu.memory_space<vmem>>, %arg8: memref<4x32xbf16, #tpu.memory_space<vmem>>, %arg9: memref<1x32xf32, #tpu.memory_space<vmem>>, %arg10: memref<32x32xbf16, #tpu.memory_space<vmem>>, %arg11: memref<1x32xf32, #tpu.memory_space<vmem>>, %arg12: memref<32x3xbf16, #tpu.memory_space<vmem>>, %arg13: memref<1x3xf32, #tpu.memory_space<vmem>>, %arg14: memref<3x8x8xf32, #tpu.memory_space<vmem>>, %arg15: memref<3x8x8xf32, #tpu.memory_space<vmem>>) attributes {dimension_semantics = [#tpu.dimension_semantics<parallel>], iteration_bounds = array<i64: 2>, scalar_prefetch = 0 : i64, scratch_operands = 0 : i64, tpu.core_type = #tpu.core_type<tc>, window_params = [{transform_indices = @transform_0, window_bounds = array<i64: 1, 8, 4>}, {pipeline_mode = #tpu.pipeline_mode<synchronous>, transform_indices = @transform_1, window_bounds = array<i64: 4, 32>}, {pipeline_mode = #tpu.pipeline_mode<synchronous>, transform_indices = @transform_2, window_bounds = array<i64: 1, 32>}, {pipeline_mode = #tpu.pipeline_mode<synchronous>, transform_indices = @transform_3, window_bounds = array<i64: 32, 32>}, {pipeline_mode = #tpu.pipeline_mode<synchronous>, transform_indices = @transform_4, window_bounds = array<i64: 1, 32>}, {pipeline_mode = #tpu.pipeline_mode<synchronous>, transform_indices = @transform_5, window_bounds = array<i64: 32, 3>}, {pipeline_mode = #tpu.pipeline_mode<synchronous>, transform_indices = @transform_6, window_bounds = array<i64: 1, 3>}, {pipeline_mode = #tpu.pipeline_mode<synchronous>, transform_indices = @transform_7, window_bounds = array<i64: 4, 32>}, {pipeline_mode = #tpu.pipeline_mode<synchronous>, transform_indices = @transform_8, window_bounds = array<i64: 1, 32>}, {pipeline_mode = #tpu.pipeline_mode<synchronous>, transform_indices = @transform_9, window_bounds = array<i64: 32, 32>}, {pipeline_mode = #tpu.pipeline_mode<synchronous>, transform_indices = @transform_10, window_bounds = array<i64: 1, 32>}, {pipeline_mode = #tpu.pipeline_mode<synchronous>, transform_indices = @transform_11, window_bounds = array<i64: 32, 3>}, {pipeline_mode = #tpu.pipeline_mode<synchronous>, transform_indices = @transform_12, window_bounds = array<i64: 1, 3>}, {transform_indices = @transform_13, window_bounds = array<i64: 3, 8, 8>}, {transform_indices = @transform_14, window_bounds = array<i64: 3, 8, 8>}]} {
    %c0 = arith.constant 0 : index
    %c0_0 = arith.constant 0 : index
    %c0_1 = arith.constant 0 : index
    %0 = vector.load %arg1[%c0, %c0_0, %c0_1] : memref<1x8x4xf32, #tpu.memory_space<vmem>>, vector<1x8x4xf32>
    %1 = arith.truncf %0 : vector<1x8x4xf32> to vector<1x8x4xbf16>
    %2 = vector.shape_cast %1 : vector<1x8x4xbf16> to vector<8x4xbf16>
    %c0_2 = arith.constant 0 : index
    %c0_3 = arith.constant 0 : index
    %3 = vector.load %arg2[%c0_2, %c0_3] : memref<4x32xbf16, #tpu.memory_space<vmem>>, vector<4x32xbf16>
    %cst = arith.constant dense<0.000000e+00> : vector<8x32xf32>
    %4 = tpu.matmul %2, %3, %cst {dimension_numbers = #tpu.dot_dimension_numbers<[1], [0], [0], [1], [0, 0, 1, 1], [], []>} : vector<8x4xbf16>, vector<4x32xbf16>, vector<8x32xf32> -> vector<8x32xf32>
    %c0_4 = arith.constant 0 : index
    %c0_5 = arith.constant 0 : index
    %5 = vector.load %arg3[%c0_4, %c0_5] : memref<1x32xf32, #tpu.memory_space<vmem>>, vector<1x32xf32>
    %6 = vector.broadcast %5 : vector<1x32xf32> to vector<8x32xf32>
    %7 = arith.addf %4, %6 : vector<8x32xf32>
    %cst_6 = arith.constant 0.000000e+00 : f32
    %8 = vector.broadcast %cst_6 : f32 to vector<8x32xf32>
    %9 = arith.maximumf %7, %8 : vector<8x32xf32>
    %10 = arith.truncf %9 : vector<8x32xf32> to vector<8x32xbf16>
    %c0_7 = arith.constant 0 : index
    %c0_8 = arith.constant 0 : index
    %11 = vector.load %arg4[%c0_7, %c0_8] : memref<32x32xbf16, #tpu.memory_space<vmem>>, vector<32x32xbf16>
    %cst_9 = arith.constant dense<0.000000e+00> : vector<8x32xf32>
    %12 = tpu.matmul %10, %11, %cst_9 {dimension_numbers = #tpu.dot_dimension_numbers<[1], [0], [0], [1], [0, 0, 1, 1], [], []>} : vector<8x32xbf16>, vector<32x32xbf16>, vector<8x32xf32> -> vector<8x32xf32>
    %c0_10 = arith.constant 0 : index
    %c0_11 = arith.constant 0 : index
    %13 = vector.load %arg5[%c0_10, %c0_11] : memref<1x32xf32, #tpu.memory_space<vmem>>, vector<1x32xf32>
    %14 = vector.broadcast %13 : vector<1x32xf32> to vector<8x32xf32>
    %15 = arith.addf %12, %14 : vector<8x32xf32>
    %cst_12 = arith.constant 0.000000e+00 : f32
    %16 = vector.broadcast %cst_12 : f32 to vector<8x32xf32>
    %17 = arith.maximumf %15, %16 : vector<8x32xf32>
    %18 = arith.truncf %17 : vector<8x32xf32> to vector<8x32xbf16>
    %c0_13 = arith.constant 0 : index
    %c0_14 = arith.constant 0 : index
    %19 = vector.load %arg6[%c0_13, %c0_14] : memref<32x3xbf16, #tpu.memory_space<vmem>>, vector<32x3xbf16>
    %cst_15 = arith.constant dense<0.000000e+00> : vector<8x3xf32>
    %20 = tpu.matmul %18, %19, %cst_15 {dimension_numbers = #tpu.dot_dimension_numbers<[1], [0], [0], [1], [0, 0, 1, 1], [], []>} : vector<8x32xbf16>, vector<32x3xbf16>, vector<8x3xf32> -> vector<8x3xf32>
    %c0_16 = arith.constant 0 : index
    %c0_17 = arith.constant 0 : index
    %21 = vector.load %arg7[%c0_16, %c0_17] : memref<1x3xf32, #tpu.memory_space<vmem>>, vector<1x3xf32>
    %22 = vector.broadcast %21 : vector<1x3xf32> to vector<8x3xf32>
    %23 = arith.addf %20, %22 : vector<8x3xf32>
    %c0_18 = arith.constant 0 : index
    %c0_19 = arith.constant 0 : index
    %24 = vector.load %arg8[%c0_18, %c0_19] : memref<4x32xbf16, #tpu.memory_space<vmem>>, vector<4x32xbf16>
    %cst_20 = arith.constant dense<0.000000e+00> : vector<8x32xf32>
    %25 = tpu.matmul %2, %24, %cst_20 {dimension_numbers = #tpu.dot_dimension_numbers<[1], [0], [0], [1], [0, 0, 1, 1], [], []>} : vector<8x4xbf16>, vector<4x32xbf16>, vector<8x32xf32> -> vector<8x32xf32>
    %c0_21 = arith.constant 0 : index
    %c0_22 = arith.constant 0 : index
    %26 = vector.load %arg9[%c0_21, %c0_22] : memref<1x32xf32, #tpu.memory_space<vmem>>, vector<1x32xf32>
    %27 = vector.broadcast %26 : vector<1x32xf32> to vector<8x32xf32>
    %28 = arith.addf %25, %27 : vector<8x32xf32>
    %cst_23 = arith.constant 0.000000e+00 : f32
    %29 = vector.broadcast %cst_23 : f32 to vector<8x32xf32>
    %30 = arith.maximumf %28, %29 : vector<8x32xf32>
    %31 = arith.truncf %30 : vector<8x32xf32> to vector<8x32xbf16>
    %c0_24 = arith.constant 0 : index
    %c0_25 = arith.constant 0 : index
    %32 = vector.load %arg10[%c0_24, %c0_25] : memref<32x32xbf16, #tpu.memory_space<vmem>>, vector<32x32xbf16>
    %cst_26 = arith.constant dense<0.000000e+00> : vector<8x32xf32>
    %33 = tpu.matmul %31, %32, %cst_26 {dimension_numbers = #tpu.dot_dimension_numbers<[1], [0], [0], [1], [0, 0, 1, 1], [], []>} : vector<8x32xbf16>, vector<32x32xbf16>, vector<8x32xf32> -> vector<8x32xf32>
    %c0_27 = arith.constant 0 : index
    %c0_28 = arith.constant 0 : index
    %34 = vector.load %arg11[%c0_27, %c0_28] : memref<1x32xf32, #tpu.memory_space<vmem>>, vector<1x32xf32>
    %35 = vector.broadcast %34 : vector<1x32xf32> to vector<8x32xf32>
    %36 = arith.addf %33, %35 : vector<8x32xf32>
    %cst_29 = arith.constant 0.000000e+00 : f32
    %37 = vector.broadcast %cst_29 : f32 to vector<8x32xf32>
    %38 = arith.maximumf %36, %37 : vector<8x32xf32>
    %39 = arith.truncf %38 : vector<8x32xf32> to vector<8x32xbf16>
    %c0_30 = arith.constant 0 : index
    %c0_31 = arith.constant 0 : index
    %40 = vector.load %arg12[%c0_30, %c0_31] : memref<32x3xbf16, #tpu.memory_space<vmem>>, vector<32x3xbf16>
    %cst_32 = arith.constant dense<0.000000e+00> : vector<8x3xf32>
    %41 = tpu.matmul %39, %40, %cst_32 {dimension_numbers = #tpu.dot_dimension_numbers<[1], [0], [0], [1], [0, 0, 1, 1], [], []>} : vector<8x32xbf16>, vector<32x3xbf16>, vector<8x3xf32> -> vector<8x3xf32>
    %c0_33 = arith.constant 0 : index
    %c0_34 = arith.constant 0 : index
    %42 = vector.load %arg13[%c0_33, %c0_34] : memref<1x3xf32, #tpu.memory_space<vmem>>, vector<1x3xf32>
    %43 = vector.broadcast %42 : vector<1x3xf32> to vector<8x3xf32>
    %44 = arith.addf %41, %43 : vector<8x3xf32>
    %45 = vector.shape_cast %23 : vector<8x3xf32> to vector<1x8x3xf32>
    %46 = tpu.transpose %45, [0, 2, 1] : vector<1x8x3xf32> -> vector<1x3x8xf32>
    %47 = vector.shape_cast %46 : vector<1x3x8xf32> to vector<3x8xf32>
    %48 = vector.shape_cast %44 : vector<8x3xf32> to vector<1x8x3xf32>
    %49 = tpu.transpose %48, [0, 2, 1] : vector<1x8x3xf32> -> vector<1x3x8xf32>
    %50 = vector.shape_cast %49 : vector<1x3x8xf32> to vector<3x8xf32>
    %51 = math.exp %47 : vector<3x8xf32>
    %52 = tpu.iota {dimensions = array<i32: 0>} : vector<8x8xi32>
    %53 = tpu.iota {dimensions = array<i32: 1>} : vector<8x8xi32>
    %54 = arith.cmpi eq, %52, %53 : vector<8x8xi32>
    %55 = arith.cmpi sgt, %52, %53 : vector<8x8xi32>
    %56 = vector.shape_cast %50 : vector<3x8xf32> to vector<3x8x1xf32>
    %57 = vector.shape_cast %50 : vector<3x8xf32> to vector<3x1x8xf32>
    %58 = vector.broadcast %56 : vector<3x8x1xf32> to vector<3x8x8xf32>
    %59 = vector.broadcast %57 : vector<3x1x8xf32> to vector<3x8x8xf32>
    %60 = arith.mulf %58, %59 : vector<3x8x8xf32>
    %61 = vector.shape_cast %51 : vector<3x8xf32> to vector<3x8x1xf32>
    %cst_35 = arith.constant 0.000000e+00 : f32
    %62 = vector.shape_cast %55 : vector<8x8xi1> to vector<1x8x8xi1>
    %63 = vector.broadcast %62 : vector<1x8x8xi1> to vector<3x8x8xi1>
    %64 = vector.broadcast %cst_35 : f32 to vector<3x8x8xf32>
    %65 = arith.select %63, %60, %64 : vector<3x8x8xi1>, vector<3x8x8xf32>
    %66 = vector.shape_cast %54 : vector<8x8xi1> to vector<1x8x8xi1>
    %67 = vector.broadcast %66 : vector<1x8x8xi1> to vector<3x8x8xi1>
    %68 = vector.shape_cast %61 : vector<3x8x1xf32> to vector<3x8x1xf32>
    %69 = vector.broadcast %68 : vector<3x8x1xf32> to vector<3x8x8xf32>
    %70 = arith.select %67, %69, %65 : vector<3x8x8xi1>, vector<3x8x8xf32>
    %c0_36 = arith.constant 0 : index
    %c0_37 = arith.constant 0 : index
    %c0_38 = arith.constant 0 : index
    %71 = vector.load %arg14[%c0_36, %c0_37, %c0_38] : memref<3x8x8xf32, #tpu.memory_space<vmem>>, vector<3x8x8xf32>
    tpu.vector_store %arg14[%c0_36, %c0_37, %c0_38], %70 {strides = array<i32>} : memref<3x8x8xf32, #tpu.memory_space<vmem>>, vector<3x8x8xf32>,
    %72 = arith.mulf %50, %50 : vector<3x8xf32>
    %73 = vector.shape_cast %72 : vector<3x8xf32> to vector<3x1x8xf32>
    %cst_39 = arith.constant 0.000000e+00 : f32
    %74 = vector.shape_cast %55 : vector<8x8xi1> to vector<1x8x8xi1>
    %75 = vector.broadcast %74 : vector<1x8x8xi1> to vector<3x8x8xi1>
    %76 = vector.shape_cast %73 : vector<3x1x8xf32> to vector<3x1x8xf32>
    %77 = vector.broadcast %76 : vector<3x1x8xf32> to vector<3x8x8xf32>
    %78 = vector.broadcast %cst_39 : f32 to vector<3x8x8xf32>
    %79 = arith.select %75, %77, %78 : vector<3x8x8xi1>, vector<3x8x8xf32>
    %cst_40 = arith.constant dense<0.000000e+00> : vector<3x8xf32>
    %80 = vector.multi_reduction <add>, %79, %cst_40 [2] : vector<3x8x8xf32> to vector<3x8xf32>
    %81 = arith.addf %51, %80 : vector<3x8xf32>
    %82 = vector.shape_cast %81 : vector<3x8xf32> to vector<3x1x8xf32>
    %83 = vector.shape_cast %81 : vector<3x8xf32> to vector<3x8x1xf32>
    %84 = vector.shape_cast %55 : vector<8x8xi1> to vector<1x8x8xi1>
    %85 = vector.broadcast %84 : vector<1x8x8xi1> to vector<3x8x8xi1>
    %86 = vector.shape_cast %82 : vector<3x1x8xf32> to vector<3x1x8xf32>
    %87 = vector.broadcast %86 : vector<3x1x8xf32> to vector<3x8x8xf32>
    %88 = vector.shape_cast %83 : vector<3x8x1xf32> to vector<3x8x1xf32>
    %89 = vector.broadcast %88 : vector<3x8x1xf32> to vector<3x8x8xf32>
    %90 = arith.select %85, %87, %89 : vector<3x8x8xi1>, vector<3x8x8xf32>
    %91 = arith.mulf %60, %90 : vector<3x8x8xf32>
    %92 = arith.mulf %51, %51 : vector<3x8xf32>
    %93 = arith.mulf %72, %80 : vector<3x8xf32>
    %94 = arith.addf %92, %93 : vector<3x8xf32>
    %cst_41 = arith.constant 1.000000e-03 : f32
    %95 = vector.broadcast %cst_41 : f32 to vector<3x8xf32>
    %96 = arith.addf %94, %95 : vector<3x8xf32>
    %97 = vector.shape_cast %96 : vector<3x8xf32> to vector<3x8x1xf32>
    %98 = vector.shape_cast %54 : vector<8x8xi1> to vector<1x8x8xi1>
    %99 = vector.broadcast %98 : vector<1x8x8xi1> to vector<3x8x8xi1>
    %100 = vector.shape_cast %97 : vector<3x8x1xf32> to vector<3x8x1xf32>
    %101 = vector.broadcast %100 : vector<3x8x1xf32> to vector<3x8x8xf32>
    %102 = arith.select %99, %101, %91 : vector<3x8x8xi1>, vector<3x8x8xf32>
    %c0_42 = arith.constant 0 : index
    %c0_43 = arith.constant 0 : index
    %c0_44 = arith.constant 0 : index
    %103 = vector.load %arg15[%c0_42, %c0_43, %c0_44] : memref<3x8x8xf32, #tpu.memory_space<vmem>>, vector<3x8x8xf32>
    tpu.vector_store %arg15[%c0_42, %c0_43, %c0_44], %102 {strides = array<i32>} : memref<3x8x8xf32, #tpu.memory_space<vmem>>, vector<3x8x8xf32>,
    return
  }
  func.func @transform_0(%arg0: i32) -> (i32, i32, i32) {
    %c0_i32 = arith.constant 0 : i32
    %c0_i32_0 = arith.constant 0 : i32
    %c0_i32_1 = arith.constant 0 : i32
    return %arg0, %c0_i32, %c0_i32_0 : i32, i32, i32
  }
  func.func @transform_1(%arg0: i32) -> (i32, i32) {
    %c0_i32 = arith.constant 0 : i32
    %c0_i32_0 = arith.constant 0 : i32
    %c0_i32_1 = arith.constant 0 : i32
    return %c0_i32, %c0_i32_0 : i32, i32
  }
  func.func @transform_2(%arg0: i32) -> (i32, i32) {
    %c0_i32 = arith.constant 0 : i32
    %c0_i32_0 = arith.constant 0 : i32
    %c0_i32_1 = arith.constant 0 : i32
    return %c0_i32, %c0_i32_0 : i32, i32
  }
  func.func @transform_3(%arg0: i32) -> (i32, i32) {
    %c0_i32 = arith.constant 0 : i32
    %c0_i32_0 = arith.constant 0 : i32
    %c0_i32_1 = arith.constant 0 : i32
    return %c0_i32, %c0_i32_0 : i32, i32
  }
  func.func @transform_4(%arg0: i32) -> (i32, i32) {
    %c0_i32 = arith.constant 0 : i32
    %c0_i32_0 = arith.constant 0 : i32
    %c0_i32_1 = arith.constant 0 : i32
    return %c0_i32, %c0_i32_0 : i32, i32
  }
  func.func @transform_5(%arg0: i32) -> (i32, i32) {
    %c0_i32 = arith.constant 0 : i32
    %c0_i32_0 = arith.constant 0 : i32
    %c0_i32_1 = arith.constant 0 : i32
    return %c0_i32, %c0_i32_0 : i32, i32
  }
  func.func @transform_6(%arg0: i32) -> (i32, i32) {
    %c0_i32 = arith.constant 0 : i32
    %c0_i32_0 = arith.constant 0 : i32
    %c0_i32_1 = arith.constant 0 : i32
    return %c0_i32, %c0_i32_0 : i32, i32
  }
  func.func @transform_7(%arg0: i32) -> (i32, i32) {
    %c0_i32 = arith.constant 0 : i32
    %c0_i32_0 = arith.constant 0 : i32
    %c0_i32_1 = arith.constant 0 : i32
    return %c0_i32, %c0_i32_0 : i32, i32
  }
  func.func @transform_8(%arg0: i32) -> (i32, i32) {
    %c0_i32 = arith.constant 0 : i32
    %c0_i32_0 = arith.constant 0 : i32
    %c0_i32_1 = arith.constant 0 : i32
    return %c0_i32, %c0_i32_0 : i32, i32
  }
  func.func @transform_9(%arg0: i32) -> (i32, i32) {
    %c0_i32 = arith.constant 0 : i32
    %c0_i32_0 = arith.constant 0 : i32
    %c0_i32_1 = arith.constant 0 : i32
    return %c0_i32, %c0_i32_0 : i32, i32
  }
  func.func @transform_10(%arg0: i32) -> (i32, i32) {
    %c0_i32 = arith.constant 0 : i32
    %c0_i32_0 = arith.constant 0 : i32
    %c0_i32_1 = arith.constant 0 : i32
    return %c0_i32, %c0_i32_0 : i32, i32
  }
  func.func @transform_11(%arg0: i32) -> (i32, i32) {
    %c0_i32 = arith.constant 0 : i32
    %c0_i32_0 = arith.constant 0 : i32
    %c0_i32_1 = arith.constant 0 : i32
    return %c0_i32, %c0_i32_0 : i32, i32
  }
  func.func @transform_12(%arg0: i32) -> (i32, i32) {
    %c0_i32 = arith.constant 0 : i32
    %c0_i32_0 = arith.constant 0 : i32
    %c0_i32_1 = arith.constant 0 : i32
    return %c0_i32, %c0_i32_0 : i32, i32
  }
  func.func @transform_13(%arg0: i32) -> (i32, i32, i32) {
    %c0_i32 = arith.constant 0 : i32
    %c0_i32_0 = arith.constant 0 : i32
    %c0_i32_1 = arith.constant 0 : i32
    return %arg0, %c0_i32, %c0_i32_0 : i32, i32, i32
  }
  func.func @transform_14(%arg0: i32) -> (i32, i32, i32) {
    %c0_i32 = arith.constant 0 : i32
    %c0_i32_0 = arith.constant 0 : i32
    %c0_i32_1 = arith.constant 0 : i32
    return %arg0, %c0_i32, %c0_i32_0 : i32, i32, i32
  }
}

</mosaic_0001>

<llo_original>
// kernel: encoder_covariance_forward.1
$region0: #{encoder_covariance_forward.1}
  #allocation0 [shape = 'u32[]', space=smem, size = 0x4, offset = 0x4, fixed_abs, tag = 'smem constant byte address 0x4 - core index']
  #allocation1 [shape = 'u32[144,128]{1,0:T(1,128)}', space=vmem, size = 0x12000, scoped, tag = 'internal scratch']
  %s0 = inlined_call_operand.vmem [shape: f32[2,8,4], index: 0, kind: input, shape index: {}]
  %s1 = inlined_call_operand.vmem [shape: bf16[4,32], index: 1, kind: input, shape index: {}]
  %s2 = inlined_call_operand.vmem [shape: f32[1,32], index: 2, kind: input, shape index: {}]
  %s3 = inlined_call_operand.vmem [shape: bf16[32,32], index: 3, kind: input, shape index: {}]
  %s4 = inlined_call_operand.vmem [shape: f32[1,32], index: 4, kind: input, shape index: {}]
  %s5 = inlined_call_operand.vmem [shape: bf16[32,3], index: 5, kind: input, shape index: {}]
  %s6 = inlined_call_operand.vmem [shape: f32[1,3], index: 6, kind: input, shape index: {}]
  %s7 = inlined_call_operand.vmem [shape: bf16[4,32], index: 7, kind: input, shape index: {}]
  %s8 = inlined_call_operand.vmem [shape: f32[1,32], index: 8, kind: input, shape index: {}]
  %s9 = inlined_call_operand.vmem [shape: bf16[32,32], index: 9, kind: input, shape index: {}]
  %s10 = inlined_call_operand.vmem [shape: f32[1,32], index: 10, kind: input, shape index: {}]
  %s11 = inlined_call_operand.vmem [shape: bf16[32,3], index: 11, kind: input, shape index: {}]
  %s12 = inlined_call_operand.vmem [shape: f32[1,3], index: 12, kind: input, shape index: {}]
  %s13 = inlined_call_operand.hbm [shape: f32[6,8,8], index: 13, kind: output, shape index: {0}]
  %s14 = inlined_call_operand.hbm [shape: f32[6,8,8], index: 14, kind: output, shape index: {1}]
  %15 = xla_tuple %s13, %s14
  %s16 = sld [smem:[#allocation0]]
  $region93: #{encoder_covariance_forward.1} parent=0
    _
  %s18 = ssub.s32 1, %s16
  %s19 = scalar_select 0, %s18, %s16
  $region1: #{encoder_covariance_forward.1} parent=0
    #allocation2 [shape = 'u8[24576]{0}', space=vmem, size = 0x6000, scoped, tag = 'output window, operand 0']
    #allocation3 [shape = 's32[2]{0}', space=sflag, size = 0x8, scoped, tag = 'scoped memory for encoder_covariance_forward.1']
    #allocation4 [shape = 'u8[24576]{0}', space=vmem, size = 0x6000, scoped, tag = 'output window, operand 1']
    #allocation5 [shape = 's32[2]{0}', space=sflag, size = 0x8, scoped, tag = 'scoped memory for encoder_covariance_forward.1']
    %20 = vsyncpa [#allocation3], 0
    %s21 = scalar_lea.sflag [#allocation3], 1
    %22 = vsyncpa %s21, 0
    %23 = vsyncpa [#allocation5], 0
    %s24 = scalar_lea.sflag [#allocation5], 1
    %25 = vsyncpa %s24, 0
    loop: start=0, step=1, limit=4
    $region2: #{encoder_covariance_forward.1} parent=1 // loop_pre_header
      _
    $region3: #{encoder_covariance_forward.1} parent=1 // loop_header
      %s27 = sphi 0, %s31
      %p28 = scmp.ge.s32.totalorder %s27, 4
      %s37 = sphi 0, %s39
      %s40 = sphi 0, %s37
      %s41 = sphi 0, %s40
      %s57 = sphi 0, %s41
      %s61 = sphi 0, %s61
      %s63 = sphi 0, %s61
      %s64 = sphi 0, %s63
      %s78 = sphi 0, %s64
      %s82 = sphi 0, %s82
      %s84 = sphi 0, %s82
      %s85 = sphi 0, %s84
      %s99 = sphi 0, %s85
      %s103 = sphi 0, %s103
      %s105 = sphi 0, %s103
      %s106 = sphi 0, %s105
      %s120 = sphi 0, %s106
      %s124 = sphi 0, %s124
      %s126 = sphi 0, %s124
      %s127 = sphi 0, %s126
      %s141 = sphi 0, %s127
      %s145 = sphi 0, %s145
      %s147 = sphi 0, %s145
      %s148 = sphi 0, %s147
      %s162 = sphi 0, %s148
      %s166 = sphi 0, %s166
      %s168 = sphi 0, %s166
      %s169 = sphi 0, %s168
      %s183 = sphi 0, %s169
      %s187 = sphi 0, %s187
      %s189 = sphi 0, %s187
      %s190 = sphi 0, %s189
      %s204 = sphi 0, %s190
      %s208 = sphi 0, %s208
      %s210 = sphi 0, %s208
      %s211 = sphi 0, %s210
      %s225 = sphi 0, %s211
      %s229 = sphi 0, %s229
      %s231 = sphi 0, %s229
      %s232 = sphi 0, %s231
      %s246 = sphi 0, %s232
      %s250 = sphi 0, %s250
      %s252 = sphi 0, %s250
      %s253 = sphi 0, %s252
      %s267 = sphi 0, %s253
      %s271 = sphi 0, %s271
      %s273 = sphi 0, %s271
      %s274 = sphi 0, %s273
      %s288 = sphi 0, %s274
      %s292 = sphi 0, %s292
      %s294 = sphi 0, %s292
      %s295 = sphi 0, %s294
      %s309 = sphi 0, %s295
      %s315 = sphi 0, %s317
      %s318 = sphi 0, %s315
      %s319 = sphi 0, %s318
      %s335 = sphi 0, %s319
      %s341 = sphi 0, %s343
      %s344 = sphi 0, %s341
      %s345 = sphi 0, %s344
      %s361 = sphi 0, %s345
    $region4: #{encoder_covariance_forward.1} parent=1 // loop_header_branch
      %30 = sbr.rel (%p28) target = $region8
    $region5: #{encoder_covariance_forward.1} parent=1 // loop_body
      %s32 = ssub.s32 %s27, 1
      %s33 = ssub.s32 %s27, 2
      %s34 = sadd.s32 %s27, 1
      %s35 = ssub.s32 %s27, %s34
      %p36 = scmp.eq.s32.totalorder %s35, 0
      %s38 = sadd.s32 %s37, 1
      %s39 = scalar_select %p36, %s37, %s38
      %p42 = pneg %p36
      %p43 = scmp.eq.s32.totalorder %s27, 1
      %p44 = por %p42, %p43
      %p45 = scmp.ne.s32.totalorder %s37, %s40
      %p46 = scmp.eq.s32.totalorder %s27, 0
      %p47 = por %p45, %p46
      %p48 = scmp.ne.s32.totalorder %s37, %s40
      %p49 = scmp.eq.s32.totalorder %s32, 1
      %p50 = por %p48, %p49
      %p51 = scmp.ne.s32.totalorder %s40, %s41
      %p52 = scmp.eq.s32.totalorder %s32, 0
      %p53 = por %p51, %p52
      %p54 = scmp.ne.s32.totalorder %s40, %s41
      %p55 = scmp.eq.s32.totalorder %s33, 1
      %p56 = por %p54, %p55
      %p58 = scmp.ne.s32.totalorder %s41, %s57
      %p59 = scmp.eq.s32.totalorder %s33, 0
      %p60 = por %p58, %p59
      %s62 = sadd.s32 %s61, 1
      %p65 = scmp.eq.s32.totalorder %s27, 1
      %p66 = scmp.ne.s32.totalorder %s61, %s63
      %p67 = scmp.eq.s32.totalorder %s27, 0
      %p68 = por %p66, %p67
      %p69 = scmp.ne.s32.totalorder %s61, %s63
      %p70 = scmp.eq.s32.totalorder %s32, 1
      %p71 = por %p69, %p70
      %p72 = scmp.ne.s32.totalorder %s63, %s64
      %p73 = scmp.eq.s32.totalorder %s32, 0
      %p74 = por %p72, %p73
      %p75 = scmp.ne.s32.totalorder %s63, %s64
      %p76 = scmp.eq.s32.totalorder %s33, 1
      %p77 = por %p75, %p76
      %p79 = scmp.ne.s32.totalorder %s64, %s78
      %p80 = scmp.eq.s32.totalorder %s33, 0
      %p81 = por %p79, %p80
      %s83 = sadd.s32 %s82, 1
      %p86 = scmp.eq.s32.totalorder %s27, 1
      %p87 = scmp.ne.s32.totalorder %s82, %s84
      %p88 = scmp.eq.s32.totalorder %s27, 0
      %p89 = por %p87, %p88
      %p90 = scmp.ne.s32.totalorder %s82, %s84
      %p91 = scmp.eq.s32.totalorder %s32, 1
      %p92 = por %p90, %p91
      %p93 = scmp.ne.s32.totalorder %s84, %s85
      %p94 = scmp.eq.s32.totalorder %s32, 0
      %p95 = por %p93, %p94
      %p96 = scmp.ne.s32.totalorder %s84, %s85
      %p97 = scmp.eq.s32.totalorder %s33, 1
      %p98 = por %p96, %p97
      %p100 = scmp.ne.s32.totalorder %s85, %s99
      %p101 = scmp.eq.s32.totalorder %s33, 0
      %p102 = por %p100, %p101
      %s104 = sadd.s32 %s103, 1
      %p107 = scmp.eq.s32.totalorder %s27, 1
      %p108 = scmp.ne.s32.totalorder %s103, %s105
      %p109 = scmp.eq.s32.totalorder %s27, 0
      %p110 = por %p108, %p109
      %p111 = scmp.ne.s32.totalorder %s103, %s105
      %p112 = scmp.eq.s32.totalorder %s32, 1
      %p113 = por %p111, %p112
      %p114 = scmp.ne.s32.totalorder %s105, %s106
      %p115 = scmp.eq.s32.totalorder %s32, 0
      %p116 = por %p114, %p115
      %p117 = scmp.ne.s32.totalorder %s105, %s106
      %p118 = scmp.eq.s32.totalorder %s33, 1
      %p119 = por %p117, %p118
      %p121 = scmp.ne.s32.totalorder %s106, %s120
      %p122 = scmp.eq.s32.totalorder %s33, 0
      %p123 = por %p121, %p122
      %s125 = sadd.s32 %s124, 1
      %p128 = scmp.eq.s32.totalorder %s27, 1
      %p129 = scmp.ne.s32.totalorder %s124, %s126
      %p130 = scmp.eq.s32.totalorder %s27, 0
      %p131 = por %p129, %p130
      %p132 = scmp.ne.s32.totalorder %s124, %s126
      %p133 = scmp.eq.s32.totalorder %s32, 1
      %p134 = por %p132, %p133
      %p135 = scmp.ne.s32.totalorder %s126, %s127
      %p136 = scmp.eq.s32.totalorder %s32, 0
      %p137 = por %p135, %p136
      %p138 = scmp.ne.s32.totalorder %s126, %s127
      %p139 = scmp.eq.s32.totalorder %s33, 1
      %p140 = por %p138, %p139
      %p142 = scmp.ne.s32.totalorder %s127, %s141
      %p143 = scmp.eq.s32.totalorder %s33, 0
      %p144 = por %p142, %p143
      %s146 = sadd.s32 %s145, 1
      %p149 = scmp.eq.s32.totalorder %s27, 1
      %p150 = scmp.ne.s32.totalorder %s145, %s147
      %p151 = scmp.eq.s32.totalorder %s27, 0
      %p152 = por %p150, %p151
      %p153 = scmp.ne.s32.totalorder %s145, %s147
      %p154 = scmp.eq.s32.totalorder %s32, 1
      %p155 = por %p153, %p154
      %p156 = scmp.ne.s32.totalorder %s147, %s148
      %p157 = scmp.eq.s32.totalorder %s32, 0
      %p158 = por %p156, %p157
      %p159 = scmp.ne.s32.totalorder %s147, %s148
      %p160 = scmp.eq.s32.totalorder %s33, 1
      %p161 = por %p159, %p160
      %p163 = scmp.ne.s32.totalorder %s148, %s162
      %p164 = scmp.eq.s32.totalorder %s33, 0
      %p165 = por %p163, %p164
      %s167 = sadd.s32 %s166, 1
      %p170 = scmp.eq.s32.totalorder %s27, 1
      %p171 = scmp.ne.s32.totalorder %s166, %s168
      %p172 = scmp.eq.s32.totalorder %s27, 0
      %p173 = por %p171, %p172
      %p174 = scmp.ne.s32.totalorder %s166, %s168
      %p175 = scmp.eq.s32.totalorder %s32, 1
      %p176 = por %p174, %p175
      %p177 = scmp.ne.s32.totalorder %s168, %s169
      %p178 = scmp.eq.s32.totalorder %s32, 0
      %p179 = por %p177, %p178
      %p180 = scmp.ne.s32.totalorder %s168, %s169
      %p181 = scmp.eq.s32.totalorder %s33, 1
      %p182 = por %p180, %p181
      %p184 = scmp.ne.s32.totalorder %s169, %s183
      %p185 = scmp.eq.s32.totalorder %s33, 0
      %p186 = por %p184, %p185
      %s188 = sadd.s32 %s187, 1
      %p191 = scmp.eq.s32.totalorder %s27, 1
      %p192 = scmp.ne.s32.totalorder %s187, %s189
      %p193 = scmp.eq.s32.totalorder %s27, 0
      %p194 = por %p192, %p193
      %p195 = scmp.ne.s32.totalorder %s187, %s189
      %p196 = scmp.eq.s32.totalorder %s32, 1
      %p197 = por %p195, %p196
      %p198 = scmp.ne.s32.totalorder %s189, %s190
      %p199 = scmp.eq.s32.totalorder %s32, 0
      %p200 = por %p198, %p199
      %p201 = scmp.ne.s32.totalorder %s189, %s190
      %p202 = scmp.eq.s32.totalorder %s33, 1
      %p203 = por %p201, %p202
      %p205 = scmp.ne.s32.totalorder %s190, %s204
      %p206 = scmp.eq.s32.totalorder %s33, 0
      %p207 = por %p205, %p206
      %s209 = sadd.s32 %s208, 1
      %p212 = scmp.eq.s32.totalorder %s27, 1
      %p213 = scmp.ne.s32.totalorder %s208, %s210
      %p214 = scmp.eq.s32.totalorder %s27, 0
      %p215 = por %p213, %p214
      %p216 = scmp.ne.s32.totalorder %s208, %s210
      %p217 = scmp.eq.s32.totalorder %s32, 1
      %p218 = por %p216, %p217
      %p219 = scmp.ne.s32.totalorder %s210, %s211
      %p220 = scmp.eq.s32.totalorder %s32, 0
      %p221 = por %p219, %p220
      %p222 = scmp.ne.s32.totalorder %s210, %s211
      %p223 = scmp.eq.s32.totalorder %s33, 1
      %p224 = por %p222, %p223
      %p226 = scmp.ne.s32.totalorder %s211, %s225
      %p227 = scmp.eq.s32.totalorder %s33, 0
      %p228 = por %p226, %p227
      %s230 = sadd.s32 %s229, 1
      %p233 = scmp.eq.s32.totalorder %s27, 1
      %p234 = scmp.ne.s32.totalorder %s229, %s231
      %p235 = scmp.eq.s32.totalorder %s27, 0
      %p236 = por %p234, %p235
      %p237 = scmp.ne.s32.totalorder %s229, %s231
      %p238 = scmp.eq.s32.totalorder %s32, 1
      %p239 = por %p237, %p238
      %p240 = scmp.ne.s32.totalorder %s231, %s232
      %p241 = scmp.eq.s32.totalorder %s32, 0
      %p242 = por %p240, %p241
      %p243 = scmp.ne.s32.totalorder %s231, %s232
      %p244 = scmp.eq.s32.totalorder %s33, 1
      %p245 = por %p243, %p244
      %p247 = scmp.ne.s32.totalorder %s232, %s246
      %p248 = scmp.eq.s32.totalorder %s33, 0
      %p249 = por %p247, %p248
      %s251 = sadd.s32 %s250, 1
      %p254 = scmp.eq.s32.totalorder %s27, 1
      %p255 = scmp.ne.s32.totalorder %s250, %s252
      %p256 = scmp.eq.s32.totalorder %s27, 0
      %p257 = por %p255, %p256
      %p258 = scmp.ne.s32.totalorder %s250, %s252
      %p259 = scmp.eq.s32.totalorder %s32, 1
      %p260 = por %p258, %p259
      %p261 = scmp.ne.s32.totalorder %s252, %s253
      %p262 = scmp.eq.s32.totalorder %s32, 0
      %p263 = por %p261, %p262
      %p264 = scmp.ne.s32.totalorder %s252, %s253
      %p265 = scmp.eq.s32.totalorder %s33, 1
      %p266 = por %p264, %p265
      %p268 = scmp.ne.s32.totalorder %s253, %s267
      %p269 = scmp.eq.s32.totalorder %s33, 0
      %p270 = por %p268, %p269
      %s272 = sadd.s32 %s271, 1
      %p275 = scmp.eq.s32.totalorder %s27, 1
      %p276 = scmp.ne.s32.totalorder %s271, %s273
      %p277 = scmp.eq.s32.totalorder %s27, 0
      %p278 = por %p276, %p277
      %p279 = scmp.ne.s32.totalorder %s271, %s273
      %p280 = scmp.eq.s32.totalorder %s32, 1
      %p281 = por %p279, %p280
      %p282 = scmp.ne.s32.totalorder %s273, %s274
      %p283 = scmp.eq.s32.totalorder %s32, 0
      %p284 = por %p282, %p283
      %p285 = scmp.ne.s32.totalorder %s273, %s274
      %p286 = scmp.eq.s32.totalorder %s33, 1
      %p287 = por %p285, %p286
      %p289 = scmp.ne.s32.totalorder %s274, %s288
      %p290 = scmp.eq.s32.totalorder %s33, 0
      %p291 = por %p289, %p290
      %s293 = sadd.s32 %s292, 1
      %p296 = scmp.eq.s32.totalorder %s27, 1
      %p297 = scmp.ne.s32.totalorder %s292, %s294
      %p298 = scmp.eq.s32.totalorder %s27, 0
      %p299 = por %p297, %p298
      %p300 = scmp.ne.s32.totalorder %s292, %s294
      %p301 = scmp.eq.s32.totalorder %s32, 1
      %p302 = por %p300, %p301
      %p303 = scmp.ne.s32.totalorder %s294, %s295
      %p304 = scmp.eq.s32.totalorder %s32, 0
      %p305 = por %p303, %p304
      %p306 = scmp.ne.s32.totalorder %s294, %s295
      %p307 = scmp.eq.s32.totalorder %s33, 1
      %p308 = por %p306, %p307
      %p310 = scmp.ne.s32.totalorder %s295, %s309
      %p311 = scmp.eq.s32.totalorder %s33, 0
      %p312 = por %p310, %p311
      %s313 = ssub.s32 %s27, %s34
      %p314 = scmp.eq.s32.totalorder %s313, 0
      %s316 = sadd.s32 %s315, 1
      %s317 = scalar_select %p314, %s315, %s316
      %p320 = pneg %p314
      %p321 = scmp.eq.s32.totalorder %s27, 1
      %p322 = por %p320, %p321
      %p323 = scmp.ne.s32.totalorder %s315, %s318
      %p324 = scmp.eq.s32.totalorder %s27, 0
      %p325 = por %p323, %p324
      %p326 = scmp.ne.s32.totalorder %s315, %s318
      %p327 = scmp.eq.s32.totalorder %s32, 1
      %p328 = por %p326, %p327
      %p329 = scmp.ne.s32.totalorder %s318, %s319
      %p330 = scmp.eq.s32.totalorder %s32, 0
      %p331 = por %p329, %p330
      %p332 = scmp.ne.s32.totalorder %s318, %s319
      %p333 = scmp.eq.s32.totalorder %s33, 1
      %p334 = por %p332, %p333
      %p336 = scmp.ne.s32.totalorder %s319, %s335
      %p337 = scmp.eq.s32.totalorder %s33, 0
      %p338 = por %p336, %p337
      %s339 = ssub.s32 %s27, %s34
      %p340 = scmp.eq.s32.totalorder %s339, 0
      %s342 = sadd.s32 %s341, 1
      %s343 = scalar_select %p340, %s341, %s342
      %p346 = pneg %p340
      %p347 = scmp.eq.s32.totalorder %s27, 1
      %p348 = por %p346, %p347
      %p349 = scmp.ne.s32.totalorder %s341, %s344
      %p350 = scmp.eq.s32.totalorder %s27, 0
      %p351 = por %p349, %p350
      %p352 = scmp.ne.s32.totalorder %s341, %s344
      %p353 = scmp.eq.s32.totalorder %s32, 1
      %p354 = por %p352, %p353
      %p355 = scmp.ne.s32.totalorder %s344, %s345
      %p356 = scmp.eq.s32.totalorder %s32, 0
      %p357 = por %p355, %p356
      %p358 = scmp.ne.s32.totalorder %s344, %s345
      %p359 = scmp.eq.s32.totalorder %s33, 1
      %p360 = por %p358, %p359
      %p362 = scmp.ne.s32.totalorder %s345, %s361
      %p363 = scmp.eq.s32.totalorder %s33, 0
      %p364 = por %p362, %p363
      %p365 = scmp.le.s32.totalorder 1, %s27
      %p366 = scmp.lt.s32.totalorder %s27, 3
      %p367 = pnand %p365, %p366
      %p368 = pneg %p367
      // Predicated region
      $region9: #{encoder_covariance_forward.1} parent=5 // pred_check
        _
      $region10: #{encoder_covariance_forward.1} parent=5 // pred_check_branch
        %370 = sbr.rel (%p367) target = $region12
      $region11: #{encoder_covariance_forward.1} parent=5 // pred_region
        %s371 = ssub.s32 %s27, 1
        // Predicated region
        $region13: #{encoder_covariance_forward.1} parent=11 // pred_check
          %p372 = pneg %p74
        $region14: #{encoder_covariance_forward.1} parent=11 // pred_check_branch
          %374 = sbr.rel (%p372) target = $region16
        $region15: #{encoder_covariance_forward.1} parent=11 // pred_region
          _
        $region16: #{encoder_covariance_forward.1} parent=11 // pred_fallthru
          _
        // Predicated region
        $region17: #{encoder_covariance_forward.1} parent=11 // pred_check
          %p375 = pneg %p95
        $region18: #{encoder_covariance_forward.1} parent=11 // pred_check_branch
          %377 = sbr.rel (%p375) target = $region20
        $region19: #{encoder_covariance_forward.1} parent=11 // pred_region
          _
        $region20: #{encoder_covariance_forward.1} parent=11 // pred_fallthru
          _
        // Predicated region
        $region21: #{encoder_covariance_forward.1} parent=11 // pred_check
          %p378 = pneg %p116
        $region22: #{encoder_covariance_forward.1} parent=11 // pred_check_branch
          %380 = sbr.rel (%p378) target = $region24
        $region23: #{encoder_covariance_forward.1} parent=11 // pred_region
          _
        $region24: #{encoder_covariance_forward.1} parent=11 // pred_fallthru
          _
        // Predicated region
        $region25: #{encoder_covariance_forward.1} parent=11 // pred_check
          %p381 = pneg %p137
        $region26: #{encoder_covariance_forward.1} parent=11 // pred_check_branch
          %383 = sbr.rel (%p381) target = $region28
        $region27: #{encoder_covariance_forward.1} parent=11 // pred_region
          _
        $region28: #{encoder_covariance_forward.1} parent=11 // pred_fallthru
          _
        // Predicated region
        $region29: #{encoder_covariance_forward.1} parent=11 // pred_check
          %p384 = pneg %p158
        $region30: #{encoder_covariance_forward.1} parent=11 // pred_check_branch
          %386 = sbr.rel (%p384) target = $region32
        $region31: #{encoder_covariance_forward.1} parent=11 // pred_region
          _
        $region32: #{encoder_covariance_forward.1} parent=11 // pred_fallthru
          _
        // Predicated region
        $region33: #{encoder_covariance_forward.1} parent=11 // pred_check
          %p387 = pneg %p179
        $region34: #{encoder_covariance_forward.1} parent=11 // pred_check_branch
          %389 = sbr.rel (%p387) target = $region36
        $region35: #{encoder_covariance_forward.1} parent=11 // pred_region
          _
        $region36: #{encoder_covariance_forward.1} parent=11 // pred_fallthru
          _
        // Predicated region
        $region37: #{encoder_covariance_forward.1} parent=11 // pred_check
          %p390 = pneg %p200
        $region38: #{encoder_covariance_forward.1} parent=11 // pred_check_branch
          %392 = sbr.rel (%p390) target = $region40
        $region39: #{encoder_covariance_forward.1} parent=11 // pred_region
          _
        $region40: #{encoder_covariance_forward.1} parent=11 // pred_fallthru
          _
        // Predicated region
        $region41: #{encoder_covariance_forward.1} parent=11 // pred_check
          %p393 = pneg %p221
        $region42: #{encoder_covariance_forward.1} parent=11 // pred_check_branch
          %395 = sbr.rel (%p393) target = $region44
        $region43: #{encoder_covariance_forward.1} parent=11 // pred_region
          _
        $region44: #{encoder_covariance_forward.1} parent=11 // pred_fallthru
          _
        // Predicated region
        $region45: #{encoder_covariance_forward.1} parent=11 // pred_check
          %p396 = pneg %p242
        $region46: #{encoder_covariance_forward.1} parent=11 // pred_check_branch
          %398 = sbr.rel (%p396) target = $region48
        $region47: #{encoder_covariance_forward.1} parent=11 // pred_region
          _
        $region48: #{encoder_covariance_forward.1} parent=11 // pred_fallthru
          _
        // Predicated region
        $region49: #{encoder_covariance_forward.1} parent=11 // pred_check
          %p399 = pneg %p263
        $region50: #{encoder_covariance_forward.1} parent=11 // pred_check_branch
          %401 = sbr.rel (%p399) target = $region52
        $region51: #{encoder_covariance_forward.1} parent=11 // pred_region
          _
        $region52: #{encoder_covariance_forward.1} parent=11 // pred_fallthru
          _
        // Predicated region
        $region53: #{encoder_covariance_forward.1} parent=11 // pred_check
          %p402 = pneg %p284
        $region54: #{encoder_covariance_forward.1} parent=11 // pred_check_branch
          %404 = sbr.rel (%p402) target = $region56
        $region55: #{encoder_covariance_forward.1} parent=11 // pred_region
          _
        $region56: #{encoder_covariance_forward.1} parent=11 // pred_fallthru
          _
        // Predicated region
        $region57: #{encoder_covariance_forward.1} parent=11 // pred_check
          %p405 = pneg %p305
        $region58: #{encoder_covariance_forward.1} parent=11 // pred_check_branch
          %407 = sbr.rel (%p405) target = $region60
        $region59: #{encoder_covariance_forward.1} parent=11 // pred_region
          _
        $region60: #{encoder_covariance_forward.1} parent=11 // pred_fallthru
          _
      $region12: #{encoder_covariance_forward.1} parent=5 // pred_fallthru
        _
      %p408 = scmp.lt.s32.totalorder %s27, 2
      // Predicated region
      $region61: #{encoder_covariance_forward.1} parent=5 // pred_check
        %p409 = pneg %p408
      $region62: #{encoder_covariance_forward.1} parent=5 // pred_check_branch
        %411 = sbr.rel (%p409) target = $region64
      $region63: #{encoder_covariance_forward.1} parent=5 // pred_region
        // Predicated region
        $region65: #{encoder_covariance_forward.1} parent=63 // pred_check
          %p412 = pneg %p47
        $region66: #{encoder_covariance_forward.1} parent=63 // pred_check_branch
          %414 = sbr.rel (%p412) target = $region68
        $region67: #{encoder_covariance_forward.1} parent=63 // pred_region
          %p415 = scmp.lt.s32.totalorder %s27, 1
          %s416 = scalar_select %p415, %s27, 1
          %s417 = smul.addr %s416, 8
          %s418 = scalar_lea.vmem %s0, %s417
        $region68: #{encoder_covariance_forward.1} parent=63 // pred_fallthru
          _
      $region64: #{encoder_covariance_forward.1} parent=5 // pred_fallthru
        _
      %p419 = scmp.le.s32.totalorder 1, %s27
      %p420 = scmp.lt.s32.totalorder %s27, 3
      %p421 = pnand %p419, %p420
      %p422 = pneg %p421
      // Predicated region
      $region69: #{encoder_covariance_forward.1} parent=5 // pred_check
        _
      $region70: #{encoder_covariance_forward.1} parent=5 // pred_check_branch
        %424 = sbr.rel (%p421) target = $region72
      $region71: #{encoder_covariance_forward.1} parent=5 // pred_region
        %s425 = ssub.s32 %s27, 1
        %p426 = scmp.lt.s32.totalorder %s32, 1
        %s427 = scalar_select %p426, %s32, 1
        %s428 = smul.addr %s427, 8
        %s429 = scalar_lea.vmem %s0, %s428
        %p430 = pneg %p53
        %p431 = pneg %p50
        %p432 = pneg %p74
        %p433 = pneg %p71
        %p434 = pneg %p95
        %p435 = pneg %p92
        %p436 = pneg %p116
        %p437 = pneg %p113
        %p438 = pneg %p137
        %p439 = pneg %p134
        %p440 = pneg %p158
        %p441 = pneg %p155
        %p442 = pneg %p179
        %p443 = pneg %p176
        %p444 = pneg %p200
        %p445 = pneg %p197
        %p446 = pneg %p221
        %p447 = pneg %p218
        %p448 = pneg %p242
        %p449 = pneg %p239
        %p450 = pneg %p263
        %p451 = pneg %p260
        %p452 = pneg %p284
        %p453 = pneg %p281
        %p454 = pneg %p305
        %p455 = pneg %p302
        %p456 = pneg %p331
        %p457 = pneg %p328
        %s458 = sand.u32 %s318, 1
        %s459 = scalar_lea.sflag [#allocation3], %s458
        %s460 = sand.u32 %s318, 1
        %s461 = smul.addr %s460, 24
        %s462 = scalar_lea.vmem [#allocation2], %s461
        %p463 = pneg %p357
        %p464 = pneg %p354
        %s465 = sand.u32 %s344, 1
        %s466 = scalar_lea.sflag [#allocation5], %s465
        %s467 = sand.u32 %s344, 1
        %s468 = smul.addr %s467, 24
        %s469 = scalar_lea.vmem [#allocation4], %s468
        %p470 = scmp.lt.s32.totalorder %s32, 1
        %s471 = scalar_select %p470, %s32, 1
        %s472 = smul.addr %s471, 8
        %s473 = scalar_lea.vmem %s0, %s472
        %s474 = smul.u32 3, %s32
        %s475 = smul.u32 3, %s32
        %v477 = vld [vmem:[%s473] sm:$0xff]
        %v478 = vpack.c.bf16 %v477, %v477
        %v479 = vld [vmem:[%s1] sm:$0x3]
        %v480 = vld [vmem:[%s2] sm:$0x1]
        %v482 = vlaneseq
        %v483 = vshrl.u32 %v482, 7
        %v484 = vsub.s32 0, %v483
        %v485 = vrot.slane %v480, %v484
        %vm487 = vcmask 31744
        %v489 = vsel %vm487, %v478, 0
        %vm491 = vcmask 1041408
        %v493 = vsel %vm491, %v479, 0
        %495 = vmatprep.subr.bf16.mxu0 0
        %496 = vmatpush1.bf16.msra.mxu0 0
        %497 = vmatprep.subr.bf16.mxu0 0
        %498 = vmatpush1.bf16.msra.mxu0 0
        %499 = vmatprep.subr.bf16.mxu0 0
        %500 = vmatpush1.bf16.msra.mxu0 0
        %501 = vmatprep.subr.bf16.mxu0 0
        %502 = vmatpush1.bf16.msra.mxu0 0
        %503 = vmatprep.subr.bf16.mxu0 0
        %504 = vmatpush1.bf16.msra.mxu0 0
        %505 = vmatprep.subr.bf16.mxu0 0
        %506 = vmatpush1.bf16.msra.mxu0 0
        %507 = vmatprep.subr.bf16.mxu0 0
        %508 = vmatpush1.bf16.msra.mxu0 0
        %509 = vmatprep.subr.bf16.mxu0 0
        %510 = vmatpush1.bf16.msra.mxu0 %v493
        %511 = vmatprep.subr.bf16.mxu0 0
        %512 = vmatpush2.bf16.msra.mxu0 0
        %513 = vmatprep.subr.bf16.mxu0 0
        %514 = vmatpush2.bf16.msra.mxu0 0
        %515 = vmatprep.subr.bf16.mxu0 0
        %516 = vmatpush2.bf16.msra.mxu0 0
        %517 = vmatprep.subr.bf16.mxu0 0
        %518 = vmatpush2.bf16.msra.mxu0 0
        %519 = vmatprep.subr.bf16.mxu0 0
        %520 = vmatpush2.bf16.msra.mxu0 0
        %521 = vmatprep.subr.bf16.mxu0 0
        %522 = vmatpush2.bf16.msra.mxu0 0
        %523 = vmatprep.subr.bf16.mxu0 0
        %524 = vmatpush2.bf16.msra.mxu0 0
        %525 = vmatprep.subr.bf16.mxu0 0
        %526 = vmatpush2.bf16.msra.mxu0 0
        %527 = vmatprep.mubr.bf16.mxu0 0
        %528 = vmatmul.mubr.bf16.gmra.mxu0 %v489
        %v529 = vpop.f32.mrf.mxu0
        %v530 = vadd.f32 %v485, %v529
        %v531 = vpop.f32.mrf.mxu0
        %v532 = vpop.f32.mrf.mxu0
        %v533 = vpop.f32.mrf.mxu0
        %534 = vdwg.mxu0
        %v535 = vmax.f32 %v530, 0.0
        %v536 = vpack.c.bf16 %v535, %v535
        %v537 = vld [vmem:[%s3] sm:$0xf]
        %v538 = vld [vmem:[%s3 + $0x4] sm:$0xf]
        %v539 = vld [vmem:[%s3 + $0x8] sm:$0xf]
        %v540 = vld [vmem:[%s3 + $0xc] sm:$0xf]
        %v541 = vld [vmem:[%s4] sm:$0x1]
        %v543 = vlaneseq
        %v544 = vshrl.u32 %v543, 7
        %v545 = vsub.s32 0, %v544
        %v546 = vrot.slane %v541, %v545
        %v552 = vunpack.c.l.b16 %v537
        %v553 = vunpack.c.l.b16 %v538
        %v554 = vunpack.c.l.b16 %v539
        %v555 = vunpack.c.l.b16 %v540
        %v556 = vpack.c.b16 %v553, %v552
        %v557 = vpack.c.b16 %v555, %v554
        %vm560 = vcmask 261120
        %v562 = vsel %vm560, %v536, 0
        %564 = vmatprep.subr.bf16.mxu0 0
        %565 = vmatpush1.bf16.msra.mxu0 0
        %566 = vmatprep.subr.bf16.mxu0 0
        %567 = vmatpush1.bf16.msra.mxu0 0
        %568 = vmatprep.subr.bf16.mxu0 0
        %569 = vmatpush1.bf16.msra.mxu0 0
        %570 = vmatprep.subr.bf16.mxu0 0
        %571 = vmatpush1.bf16.msra.mxu0 0
        %572 = vmatprep.subr.bf16.mxu0 0
        %573 = vmatpush1.bf16.msra.mxu0 0
        %574 = vmatprep.subr.bf16.mxu0 0
        %575 = vmatpush1.bf16.msra.mxu0 0
        %576 = vmatprep.subr.bf16.mxu0 0
        %577 = vmatpush1.bf16.msra.mxu0 %v557
        %578 = vmatprep.subr.bf16.mxu0 0
        %579 = vmatpush1.bf16.msra.mxu0 %v556
        %580 = vmatprep.subr.bf16.mxu0 0
        %581 = vmatpush2.bf16.msra.mxu0 0
        %582 = vmatprep.subr.bf16.mxu0 0
        %583 = vmatpush2.bf16.msra.mxu0 0
        %584 = vmatprep.subr.bf16.mxu0 0
        %585 = vmatpush2.bf16.msra.mxu0 0
        %586 = vmatprep.subr.bf16.mxu0 0
        %587 = vmatpush2.bf16.msra.mxu0 0
        %588 = vmatprep.subr.bf16.mxu0 0
        %589 = vmatpush2.bf16.msra.mxu0 0
        %590 = vmatprep.subr.bf16.mxu0 0
        %591 = vmatpush2.bf16.msra.mxu0 0
        %592 = vmatprep.subr.bf16.mxu0 0
        %593 = vmatpush2.bf16.msra.mxu0 0
        %594 = vmatprep.subr.bf16.mxu0 0
        %595 = vmatpush2.bf16.msra.mxu0 0
        %596 = vmatprep.mubr.bf16.mxu0 0
        %597 = vmatmul.mubr.bf16.gmra.mxu0 %v562
        %v598 = vpop.f32.mrf.mxu0
        %v599 = vadd.f32 %v546, %v598
        %v600 = vpop.f32.mrf.mxu0
        %v601 = vpop.f32.mrf.mxu0
        %v602 = vpop.f32.mrf.mxu0
        %603 = vdwg.mxu0
        %v604 = vmax.f32 %v599, 0.0
        %v605 = vpack.c.bf16 %v604, %v604
        %v606 = vld [vmem:[%s5] sm:$0xf]
        %v607 = vld [vmem:[%s5 + $0x4] sm:$0xf]
        %v608 = vld [vmem:[%s5 + $0x8] sm:$0xf]
        %v609 = vld [vmem:[%s5 + $0xc] sm:$0xf]
        %v610 = vld [vmem:[%s6] sm:$0x1]
        %v612 = vlaneseq
        %v613 = vshrl.u32 %v612, 7
        %v614 = vsub.s32 0, %v613
        %v615 = vrot.slane %v610, %v614
        %v621 = vunpack.c.l.b16 %v606
        %v622 = vunpack.c.l.b16 %v607
        %v623 = vunpack.c.l.b16 %v608
        %v624 = vunpack.c.l.b16 %v609
        %v625 = vpack.c.b16 %v622, %v621
        %v626 = vpack.c.b16 %v624, %v623
        %v630 = vsel %vm560, %v605, 0
        %632 = vmatprep.subr.bf16.mxu0 0
        %633 = vmatpush1.bf16.msra.mxu0 0
        %634 = vmatprep.subr.bf16.mxu0 0
        %635 = vmatpush1.bf16.msra.mxu0 0
        %636 = vmatprep.subr.bf16.mxu0 0
        %637 = vmatpush1.bf16.msra.mxu0 0
        %638 = vmatprep.subr.bf16.mxu0 0
        %639 = vmatpush1.bf16.msra.mxu0 0
        %640 = vmatprep.subr.bf16.mxu0 0
        %641 = vmatpush1.bf16.msra.mxu0 0
        %642 = vmatprep.subr.bf16.mxu0 0
        %643 = vmatpush1.bf16.msra.mxu0 0
        %644 = vmatprep.subr.bf16.mxu0 0
        %645 = vmatpush1.bf16.msra.mxu0 %v626
        %646 = vmatprep.subr.bf16.mxu0 0
        %647 = vmatpush1.bf16.msra.mxu0 %v625
        %648 = vmatprep.subr.bf16.mxu0 0
        %649 = vmatpush2.bf16.msra.mxu0 0
        %650 = vmatprep.subr.bf16.mxu0 0
        %651 = vmatpush2.bf16.msra.mxu0 0
        %652 = vmatprep.subr.bf16.mxu0 0
        %653 = vmatpush2.bf16.msra.mxu0 0
        %654 = vmatprep.subr.bf16.mxu0 0
        %655 = vmatpush2.bf16.msra.mxu0 0
        %656 = vmatprep.subr.bf16.mxu0 0
        %657 = vmatpush2.bf16.msra.mxu0 0
        %658 = vmatprep.subr.bf16.mxu0 0
        %659 = vmatpush2.bf16.msra.mxu0 0
        %660 = vmatprep.subr.bf16.mxu0 0
        %661 = vmatpush2.bf16.msra.mxu0 0
        %662 = vmatprep.subr.bf16.mxu0 0
        %663 = vmatpush2.bf16.msra.mxu0 0
        %664 = vmatprep.mubr.bf16.mxu0 0
        %665 = vmatmul.mubr.bf16.gmra.mxu0 %v630
        %v666 = vpop.f32.mrf.mxu0
        %v667 = vadd.f32 %v615, %v666
        %v668 = vpop.f32.mrf.mxu0
        %v669 = vpop.f32.mrf.mxu0
        %v670 = vpop.f32.mrf.mxu0
        %671 = vdwg.mxu0
        %v672 = vld [vmem:[%s7] sm:$0x3]
        %v673 = vld [vmem:[%s8] sm:$0x1]
        %v675 = vlaneseq
        %v676 = vshrl.u32 %v675, 7
        %v677 = vsub.s32 0, %v676
        %v678 = vrot.slane %v673, %v677
        %v681 = vsel %vm491, %v672, 0
        %683 = vmatprep.subr.bf16.mxu0 0
        %684 = vmatpush1.bf16.msra.mxu0 0
        %685 = vmatprep.subr.bf16.mxu0 0
        %686 = vmatpush1.bf16.msra.mxu0 0
        %687 = vmatprep.subr.bf16.mxu0 0
        %688 = vmatpush1.bf16.msra.mxu0 0
        %689 = vmatprep.subr.bf16.mxu0 0
        %690 = vmatpush1.bf16.msra.mxu0 0
        %691 = vmatprep.subr.bf16.mxu0 0
        %692 = vmatpush1.bf16.msra.mxu0 0
        %693 = vmatprep.subr.bf16.mxu0 0
        %694 = vmatpush1.bf16.msra.mxu0 0
        %695 = vmatprep.subr.bf16.mxu0 0
        %696 = vmatpush1.bf16.msra.mxu0 0
        %697 = vmatprep.subr.bf16.mxu0 0
        %698 = vmatpush1.bf16.msra.mxu0 %v681
        %699 = vmatprep.subr.bf16.mxu0 0
        %700 = vmatpush2.bf16.msra.mxu0 0
        %701 = vmatprep.subr.bf16.mxu0 0
        %702 = vmatpush2.bf16.msra.mxu0 0
        %703 = vmatprep.subr.bf16.mxu0 0
        %704 = vmatpush2.bf16.msra.mxu0 0
        %705 = vmatprep.subr.bf16.mxu0 0
        %706 = vmatpush2.bf16.msra.mxu0 0
        %707 = vmatprep.subr.bf16.mxu0 0
        %708 = vmatpush2.bf16.msra.mxu0 0
        %709 = vmatprep.subr.bf16.mxu0 0
        %710 = vmatpush2.bf16.msra.mxu0 0
        %711 = vmatprep.subr.bf16.mxu0 0
        %712 = vmatpush2.bf16.msra.mxu0 0
        %713 = vmatprep.subr.bf16.mxu0 0
        %714 = vmatpush2.bf16.msra.mxu0 0
        %715 = vmatprep.mubr.bf16.mxu0 0
        %716 = vmatmul.mubr.bf16.gmra.mxu0 %v489
        %v717 = vpop.f32.mrf.mxu0
        %v718 = vadd.f32 %v678, %v717
        %v719 = vpop.f32.mrf.mxu0
        %v720 = vpop.f32.mrf.mxu0
        %v721 = vpop.f32.mrf.mxu0
        %722 = vdwg.mxu0
        %v723 = vmax.f32 %v718, 0.0
        %v724 = vpack.c.bf16 %v723, %v723
        %v725 = vld [vmem:[%s9] sm:$0xf]
        %v726 = vld [vmem:[%s9 + $0x4] sm:$0xf]
        %v727 = vld [vmem:[%s9 + $0x8] sm:$0xf]
        %v728 = vld [vmem:[%s9 + $0xc] sm:$0xf]
        %v729 = vld [vmem:[%s10] sm:$0x1]
        %v731 = vlaneseq
        %v732 = vshrl.u32 %v731, 7
        %v733 = vsub.s32 0, %v732
        %v734 = vrot.slane %v729, %v733
        %v740 = vunpack.c.l.b16 %v725
        %v741 = vunpack.c.l.b16 %v726
        %v742 = vunpack.c.l.b16 %v727
        %v743 = vunpack.c.l.b16 %v728
        %v744 = vpack.c.b16 %v741, %v740
        %v745 = vpack.c.b16 %v743, %v742
        %v749 = vsel %vm560, %v724, 0
        %751 = vmatprep.subr.bf16.mxu0 0
        %752 = vmatpush1.bf16.msra.mxu0 0
        %753 = vmatprep.subr.bf16.mxu0 0
        %754 = vmatpush1.bf16.msra.mxu0 0
        %755 = vmatprep.subr.bf16.mxu0 0
        %756 = vmatpush1.bf16.msra.mxu0 0
        %757 = vmatprep.subr.bf16.mxu0 0
        %758 = vmatpush1.bf16.msra.mxu0 0
        %759 = vmatprep.subr.bf16.mxu0 0
        %760 = vmatpush1.bf16.msra.mxu0 0
        %761 = vmatprep.subr.bf16.mxu0 0
        %762 = vmatpush1.bf16.msra.mxu0 0
        %763 = vmatprep.subr.bf16.mxu0 0
        %764 = vmatpush1.bf16.msra.mxu0 %v745
        %765 = vmatprep.subr.bf16.mxu0 0
        %766 = vmatpush1.bf16.msra.mxu0 %v744
        %767 = vmatprep.subr.bf16.mxu0 0
        %768 = vmatpush2.bf16.msra.mxu0 0
        %769 = vmatprep.subr.bf16.mxu0 0
        %770 = vmatpush2.bf16.msra.mxu0 0
        %771 = vmatprep.subr.bf16.mxu0 0
        %772 = vmatpush2.bf16.msra.mxu0 0
        %773 = vmatprep.subr.bf16.mxu0 0
        %774 = vmatpush2.bf16.msra.mxu0 0
        %775 = vmatprep.subr.bf16.mxu0 0
        %776 = vmatpush2.bf16.msra.mxu0 0
        %777 = vmatprep.subr.bf16.mxu0 0
        %778 = vmatpush2.bf16.msra.mxu0 0
        %779 = vmatprep.subr.bf16.mxu0 0
        %780 = vmatpush2.bf16.msra.mxu0 0
        %781 = vmatprep.subr.bf16.mxu0 0
        %782 = vmatpush2.bf16.msra.mxu0 0
        %783 = vmatprep.mubr.bf16.mxu0 0
        %784 = vmatmul.mubr.bf16.gmra.mxu0 %v749
        %v785 = vpop.f32.mrf.mxu0
        %v786 = vadd.f32 %v734, %v785
        %v787 = vpop.f32.mrf.mxu0
        %v788 = vpop.f32.mrf.mxu0
        %v789 = vpop.f32.mrf.mxu0
        %790 = vdwg.mxu0
        %v791 = vmax.f32 %v786, 0.0
        %v792 = vpack.c.bf16 %v791, %v791
        %v793 = vld [vmem:[%s11] sm:$0xf]
        %v794 = vld [vmem:[%s11 + $0x4] sm:$0xf]
        %v795 = vld [vmem:[%s11 + $0x8] sm:$0xf]
        %v796 = vld [vmem:[%s11 + $0xc] sm:$0xf]
        %v797 = vld [vmem:[%s12] sm:$0x1]
        %v799 = vlaneseq
        %v800 = vshrl.u32 %v799, 7
        %v801 = vsub.s32 0, %v800
        %v802 = vrot.slane %v797, %v801
        %v808 = vunpack.c.l.b16 %v793
        %v809 = vunpack.c.l.b16 %v794
        %v810 = vunpack.c.l.b16 %v795
        %v811 = vunpack.c.l.b16 %v796
        %v812 = vpack.c.b16 %v809, %v808
        %v813 = vpack.c.b16 %v811, %v810
        %v817 = vsel %vm560, %v792, 0
        %819 = vmatprep.subr.bf16.mxu0 0
        %820 = vmatpush1.bf16.msra.mxu0 0
        %821 = vmatprep.subr.bf16.mxu0 0
        %822 = vmatpush1.bf16.msra.mxu0 0
        %823 = vmatprep.subr.bf16.mxu0 0
        %824 = vmatpush1.bf16.msra.mxu0 0
        %825 = vmatprep.subr.bf16.mxu0 0
        %826 = vmatpush1.bf16.msra.mxu0 0
        %827 = vmatprep.subr.bf16.mxu0 0
        %828 = vmatpush1.bf16.msra.mxu0 0
        %829 = vmatprep.subr.bf16.mxu0 0
        %830 = vmatpush1.bf16.msra.mxu0 0
        %831 = vmatprep.subr.bf16.mxu0 0
        %832 = vmatpush1.bf16.msra.mxu0 %v813
        %833 = vmatprep.subr.bf16.mxu0 0
        %834 = vmatpush1.bf16.msra.mxu0 %v812
        %835 = vmatprep.subr.bf16.mxu0 0
        %836 = vmatpush2.bf16.msra.mxu0 0
        %837 = vmatprep.subr.bf16.mxu0 0
        %838 = vmatpush2.bf16.msra.mxu0 0
        %839 = vmatprep.subr.bf16.mxu0 0
        %840 = vmatpush2.bf16.msra.mxu0 0
        %841 = vmatprep.subr.bf16.mxu0 0
        %842 = vmatpush2.bf16.msra.mxu0 0
        %843 = vmatprep.subr.bf16.mxu0 0
        %844 = vmatpush2.bf16.msra.mxu0 0
        %845 = vmatprep.subr.bf16.mxu0 0
        %846 = vmatpush2.bf16.msra.mxu0 0
        %847 = vmatprep.subr.bf16.mxu0 0
        %848 = vmatpush2.bf16.msra.mxu0 0
        %849 = vmatprep.subr.bf16.mxu0 0
        %850 = vmatpush2.bf16.msra.mxu0 0
        %851 = vmatprep.mubr.bf16.mxu0 0
        %852 = vmatmul.mubr.bf16.gmra.mxu0 %v817
        %v853 = vpop.f32.mrf.mxu0
        %v854 = vadd.f32 %v802, %v853
        %v855 = vpop.f32.mrf.mxu0
        %v856 = vpop.f32.mrf.mxu0
        %v857 = vpop.f32.mrf.mxu0
        %858 = vdwg.mxu0
        %859 = vxpose.xlu0.b32.start [1/16] %v667, 128
        %860 = vxpose.xlu0.b32.cont [2/16] 0.0, 128
        %861 = vxpose.xlu0.b32.cont [3/16] 0.0, 128
        %862 = vxpose.xlu0.b32.cont [4/16] 0.0, 128
        %863 = vxpose.xlu0.b32.cont [5/16] 0.0, 128
        %864 = vxpose.xlu0.b32.cont [6/16] 0.0, 128
        %865 = vxpose.xlu0.b32.cont [7/16] 0.0, 128
        %866 = vxpose.xlu0.b32.cont [8/16] 0.0, 128
        %867 = vxpose.xlu0.b32.cont [9/16] 0.0, 128
        %868 = vxpose.xlu0.b32.cont [10/16] 0.0, 128
        %869 = vxpose.xlu0.b32.cont [11/16] 0.0, 128
        %870 = vxpose.xlu0.b32.cont [12/16] 0.0, 128
        %871 = vxpose.xlu0.b32.cont [13/16] 0.0, 128
        %872 = vxpose.xlu0.b32.cont [14/16] 0.0, 128
        %873 = vxpose.xlu0.b32.cont [15/16] 0.0, 128
        %874 = vxpose.xlu0.b32.end [16/16] 0.0, 128
        %v875 = vpop.trf.xlu0
        %v876 = vpop.trf.xlu0
        %v877 = vpop.trf.xlu0
        %v878 = vpop.trf.xlu0
        %v879 = vpop.trf.xlu0
        %v880 = vpop.trf.xlu0
        %v881 = vpop.trf.xlu0
        %v882 = vpop.trf.xlu0
        %v883 = vpop.trf.xlu0
        %v884 = vpop.trf.xlu0
        %v885 = vpop.trf.xlu0
        %v886 = vpop.trf.xlu0
        %v887 = vpop.trf.xlu0
        %v888 = vpop.trf.xlu0
        %v889 = vpop.trf.xlu0
        %v890 = vpop.trf.xlu0
        %891 = vxpose.xlu0.b32.start [1/16] %v854, 128
        %892 = vxpose.xlu0.b32.cont [2/16] 0.0, 128
        %893 = vxpose.xlu0.b32.cont [3/16] 0.0, 128
        %894 = vxpose.xlu0.b32.cont [4/16] 0.0, 128
        %895 = vxpose.xlu0.b32.cont [5/16] 0.0, 128
        %896 = vxpose.xlu0.b32.cont [6/16] 0.0, 128
        %897 = vxpose.xlu0.b32.cont [7/16] 0.0, 128
        %898 = vxpose.xlu0.b32.cont [8/16] 0.0, 128
        %899 = vxpose.xlu0.b32.cont [9/16] 0.0, 128
        %900 = vxpose.xlu0.b32.cont [10/16] 0.0, 128
        %901 = vxpose.xlu0.b32.cont [11/16] 0.0, 128
        %902 = vxpose.xlu0.b32.cont [12/16] 0.0, 128
        %903 = vxpose.xlu0.b32.cont [13/16] 0.0, 128
        %904 = vxpose.xlu0.b32.cont [14/16] 0.0, 128
        %905 = vxpose.xlu0.b32.cont [15/16] 0.0, 128
        %906 = vxpose.xlu0.b32.end [16/16] 0.0, 128
        %v907 = vpop.trf.xlu0
        %v908 = vpop.trf.xlu0
        %v909 = vpop.trf.xlu0
        %v910 = vpop.trf.xlu0
        %v911 = vpop.trf.xlu0
        %v912 = vpop.trf.xlu0
        %v913 = vpop.trf.xlu0
        %v914 = vpop.trf.xlu0
        %v915 = vpop.trf.xlu0
        %v916 = vpop.trf.xlu0
        %v917 = vpop.trf.xlu0
        %v918 = vpop.trf.xlu0
        %v919 = vpop.trf.xlu0
        %v920 = vpop.trf.xlu0
        %v921 = vpop.trf.xlu0
        %v922 = vpop.trf.xlu0
        %v923 = vmul.f32 %v875, 1.442695
        %v924 = vpow.pop %v923
        %v925 = vlaneseq
        %v926 = vshrl.u32 %v925, 7
        %v927 = vlaneseq
        %v928 = vand.u32 %v927, 127
        %vm929 = vcmp.eq.s32.totalorder %v926, %v928
        %vm930 = vcmp.gt.s32.totalorder %v926, %v928
        %v931 = vlaneseq
        %v932 = vshrl.u32 %v931, 7
        %v933 = vsub.s32 0, %v932
        %v934 = vrot.slane %v907, %v933
        %936 = vbcast.lane.b32.xlu0 %v934, 256
        %v937 = vpop.permute.xlu0 %936
        %v938 = vlaneseq
        %v939 = vshrl.u32 %v938, 7
        %v940 = vsub.s32 1, %v939
        %v941 = vrot.slane %v907, %v940
        %943 = vbcast.lane.b32.xlu0 %v941, 256
        %v944 = vpop.permute.xlu0 %943
        %v945 = vlaneseq
        %v946 = vshrl.u32 %v945, 7
        %v947 = vsub.s32 2, %v946
        %v948 = vrot.slane %v907, %v947
        %950 = vbcast.lane.b32.xlu0 %v948, 256
        %v951 = vpop.permute.xlu0 %950
        %v954 = vunpack.c.l.s4 1966171168
        %v955 = vunpack.c.0.s8 %v954
        %v956 = vlaneseq
        %v957 = vshrl.u32 %v956, 7
        %v958 = vsub.s32 %v955, %v957
        %v959 = vrot.slane %v907, %v958
        %v960 = vcombine.high %v959, %v959
        %v962 = vunpack.c.l.s4 1966171168
        %v963 = vunpack.c.0.s8 %v962
        %v964 = vlaneseq
        %v965 = vshrl.u32 %v964, 7
        %v966 = vsub.s32 %v963, %v965
        %v967 = vrot.slane %v959, %v966
        %v969 = vunpack.c.l.s4 1966171168
        %v970 = vunpack.c.0.s8 %v969
        %v971 = vlaneseq
        %v972 = vshrl.u32 %v971, 7
        %v973 = vsub.s32 %v970, %v972
        %v974 = vrot.slane %v960, %v973
        %v975 = vcombine.high %v967, %v967
        %v976 = vlaneseq
        %v977 = vshrl.u32 %v976, 7
        %v978 = vsub.s32 0, %v977
        %v979 = vrot.slane %v967, %v978
        %v980 = vlaneseq
        %v981 = vshrl.u32 %v980, 7
        %v982 = vsub.s32 0, %v981
        %v983 = vrot.slane %v974, %v982
        %v984 = vlaneseq
        %v985 = vshrl.u32 %v984, 7
        %v986 = vsub.s32 0, %v985
        %v987 = vrot.slane %v975, %v986
        %v991 = vmul.f32 %v937, %v979
        %v992 = vmul.f32 %v944, %v983
        %v993 = vmul.f32 %v951, %v987
        %v994 = vlaneseq
        %v995 = vshrl.u32 %v994, 7
        %v996 = vsub.s32 0, %v995
        %v997 = vrot.slane %v924, %v996
        %999 = vbcast.lane.b32.xlu0 %v997, 256
        %v1000 = vpop.permute.xlu0 %999
        %v1001 = vlaneseq
        %v1002 = vshrl.u32 %v1001, 7
        %v1003 = vsub.s32 1, %v1002
        %v1004 = vrot.slane %v924, %v1003
        %1006 = vbcast.lane.b32.xlu0 %v1004, 256
        %v1007 = vpop.permute.xlu0 %1006
        %v1008 = vlaneseq
        %v1009 = vshrl.u32 %v1008, 7
        %v1010 = vsub.s32 2, %v1009
        %v1011 = vrot.slane %v924, %v1010
        %1013 = vbcast.lane.b32.xlu0 %v1011, 256
        %v1014 = vpop.permute.xlu0 %1013
        %v1015 = vsel %vm930, 1, 0
        %vm1016 = vcmp.eq.s32.totalorder %v1015, 1
        %v1017 = vsel %vm1016, %v991, 0.0
        %v1018 = vsel %vm1016, %v992, 0.0
        %v1019 = vsel %vm1016, %v993, 0.0
        %v1020 = vsel %vm929, 1, 0
        %vm1021 = vcmp.eq.s32.totalorder %v1020, 1
        %v1022 = vsel %vm1021, %v1000, %v1017
        %v1023 = vsel %vm1021, %v1007, %v1018
        %v1024 = vsel %vm1021, %v1014, %v1019
        %vm1025 = vcmask 64512
        %1026 = vst.msk [vmem:[%s462] sm:$0xff] %vm1025, %v1022
        %1027 = vst.msk [vmem:[%s462 + $0x8] sm:$0xff] %vm1025, %v1023
        %1028 = vst.msk [vmem:[%s462 + $0x10] sm:$0xff] %vm1025, %v1024
        %v1029 = vmul.f32 %v907, %v907
        %v1032 = vunpack.c.l.s4 1966171168
        %v1033 = vunpack.c.0.s8 %v1032
        %v1034 = vlaneseq
        %v1035 = vshrl.u32 %v1034, 7
        %v1036 = vsub.s32 %v1033, %v1035
        %v1037 = vrot.slane %v1029, %v1036
        %v1038 = vcombine.high %v1037, %v1037
        %v1040 = vunpack.c.l.s4 1966171168
        %v1041 = vunpack.c.0.s8 %v1040
        %v1042 = vlaneseq
        %v1043 = vshrl.u32 %v1042, 7
        %v1044 = vsub.s32 %v1041, %v1043
        %v1045 = vrot.slane %v1037, %v1044
        %v1047 = vunpack.c.l.s4 1966171168
        %v1048 = vunpack.c.0.s8 %v1047
        %v1049 = vlaneseq
        %v1050 = vshrl.u32 %v1049, 7
        %v1051 = vsub.s32 %v1048, %v1050
        %v1052 = vrot.slane %v1038, %v1051
        %v1053 = vcombine.high %v1045, %v1045
        %v1054 = vlaneseq
        %v1055 = vshrl.u32 %v1054, 7
        %v1056 = vsub.s32 0, %v1055
        %v1057 = vrot.slane %v1045, %v1056
        %v1058 = vlaneseq
        %v1059 = vshrl.u32 %v1058, 7
        %v1060 = vsub.s32 0, %v1059
        %v1061 = vrot.slane %v1052, %v1060
        %v1062 = vlaneseq
        %v1063 = vshrl.u32 %v1062, 7
        %v1064 = vsub.s32 0, %v1063
        %v1065 = vrot.slane %v1053, %v1064
        %v1069 = vsel %vm1016, %v1057, 0.0
        %v1070 = vsel %vm1016, %v1061, 0.0
        %v1071 = vsel %vm1016, %v1065, 0.0
        %v1072 = vsel %vm1025, %v1069, 0.0
        %1073 = vadd.xlane.f32.xlu0 %v1072
        %v1074 = vpop.xlane.xlu0 %1073
        %v1075 = vsel %vm1025, %v1070, 0.0
        %1076 = vadd.xlane.f32.xlu0 %v1075
        %v1077 = vpop.xlane.xlu0 %1076
        %v1078 = vsel %vm1025, %v1071, 0.0
        %1079 = vadd.xlane.f32.xlu0 %v1078
        %v1080 = vpop.xlane.xlu0 %1079
        %v1084 = vlaneseq
        %v1085 = vshrl.u32 %v1084, 7
        %v1086 = vsub.s32 %v928, %v1085
        %v1087 = vrot.slane %v1074, %v1086
        %v1088 = vlaneseq
        %v1089 = vshrl.u32 %v1088, 7
        %v1090 = vsub.s32 %v928, %v1089
        %v1091 = vrot.slane %v1077, %v1090
        %v1092 = vlaneseq
        %v1093 = vshrl.u32 %v1092, 7
        %v1094 = vsub.s32 %v928, %v1093
        %v1095 = vrot.slane %v1080, %v1094
        %vm1096 = vcmask 1041409
        %v1097 = vsel %vm1096, %v1091, %v1087
        %vm1098 = vcmask 1042434
        %v1099 = vsel %vm1098, %v1095, %v1097
        %v1101 = vadd.f32 %v924, %v1099
        %v1104 = vunpack.c.l.s4 1966171168
        %v1105 = vunpack.c.0.s8 %v1104
        %v1106 = vlaneseq
        %v1107 = vshrl.u32 %v1106, 7
        %v1108 = vsub.s32 %v1105, %v1107
        %v1109 = vrot.slane %v1101, %v1108
        %v1110 = vcombine.high %v1109, %v1109
        %v1112 = vunpack.c.l.s4 1966171168
        %v1113 = vunpack.c.0.s8 %v1112
        %v1114 = vlaneseq
        %v1115 = vshrl.u32 %v1114, 7
        %v1116 = vsub.s32 %v1113, %v1115
        %v1117 = vrot.slane %v1109, %v1116
        %v1119 = vunpack.c.l.s4 1966171168
        %v1120 = vunpack.c.0.s8 %v1119
        %v1121 = vlaneseq
        %v1122 = vshrl.u32 %v1121, 7
        %v1123 = vsub.s32 %v1120, %v1122
        %v1124 = vrot.slane %v1110, %v1123
        %v1125 = vcombine.high %v1117, %v1117
        %v1126 = vlaneseq
        %v1127 = vshrl.u32 %v1126, 7
        %v1128 = vsub.s32 0, %v1127
        %v1129 = vrot.slane %v1101, %v1128
        %1131 = vbcast.lane.b32.xlu0 %v1129, 256
        %v1132 = vpop.permute.xlu0 %1131
        %v1133 = vlaneseq
        %v1134 = vshrl.u32 %v1133, 7
        %v1135 = vsub.s32 1, %v1134
        %v1136 = vrot.slane %v1101, %v1135
        %1138 = vbcast.lane.b32.xlu0 %v1136, 256
        %v1139 = vpop.permute.xlu0 %1138
        %v1140 = vlaneseq
        %v1141 = vshrl.u32 %v1140, 7
        %v1142 = vsub.s32 2, %v1141
        %v1143 = vrot.slane %v1101, %v1142
        %1145 = vbcast.lane.b32.xlu0 %v1143, 256
        %v1146 = vpop.permute.xlu0 %1145
        %v1147 = vlaneseq
        %v1148 = vshrl.u32 %v1147, 7
        %v1149 = vsub.s32 0, %v1148
        %v1150 = vrot.slane %v1117, %v1149
        %v1151 = vlaneseq
        %v1152 = vshrl.u32 %v1151, 7
        %v1153 = vsub.s32 0, %v1152
        %v1154 = vrot.slane %v1124, %v1153
        %v1155 = vlaneseq
        %v1156 = vshrl.u32 %v1155, 7
        %v1157 = vsub.s32 0, %v1156
        %v1158 = vrot.slane %v1125, %v1157
        %v1162 = vsel %vm1016, %v1150, %v1132
        %v1163 = vsel %vm1016, %v1154, %v1139
        %v1164 = vsel %vm1016, %v1158, %v1146
        %v1165 = vmul.f32 %v991, %v1162
        %v1166 = vmul.f32 %v992, %v1163
        %v1167 = vmul.f32 %v993, %v1164
        %v1168 = vmul.f32 %v924, %v924
        %v1169 = vmul.f32 %v1029, %v1099
        %v1170 = vadd.f32 %v1168, %v1169
        %v1171 = vadd.f32 %v1170, 0.001
        %v1172 = vlaneseq
        %v1173 = vshrl.u32 %v1172, 7
        %v1174 = vsub.s32 0, %v1173
        %v1175 = vrot.slane %v1171, %v1174
        %1177 = vbcast.lane.b32.xlu0 %v1175, 256
        %v1178 = vpop.permute.xlu0 %1177
        %v1179 = vlaneseq
        %v1180 = vshrl.u32 %v1179, 7
        %v1181 = vsub.s32 1, %v1180
        %v1182 = vrot.slane %v1171, %v1181
        %1184 = vbcast.lane.b32.xlu0 %v1182, 256
        %v1185 = vpop.permute.xlu0 %1184
        %v1186 = vlaneseq
        %v1187 = vshrl.u32 %v1186, 7
        %v1188 = vsub.s32 2, %v1187
        %v1189 = vrot.slane %v1171, %v1188
        %1191 = vbcast.lane.b32.xlu0 %v1189, 256
        %v1192 = vpop.permute.xlu0 %1191
        %v1193 = vsel %vm1021, %v1178, %v1165
        %v1194 = vsel %vm1021, %v1185, %v1166
        %v1195 = vsel %vm1021, %v1192, %v1167
        %1196 = vst.msk [vmem:[%s469] sm:$0xff] %vm1025, %v1193
        %1197 = vst.msk [vmem:[%s469 + $0x8] sm:$0xff] %vm1025, %v1194
        %1198 = vst.msk [vmem:[%s469 + $0x10] sm:$0xff] %vm1025, %v1195
        %s1199 = sand.u32 %s318, 1
        %s1200 = scalar_lea.sflag [#allocation3], %s1199
        %s1201 = sand.u32 %s318, 1
        %s1202 = smul.addr %s1201, 24
        %s1203 = scalar_lea.vmem [#allocation2], %s1202
        %s1204 = sand.u32 %s344, 1
        %s1205 = scalar_lea.sflag [#allocation5], %s1204
        %s1206 = sand.u32 %s344, 1
        %s1207 = smul.addr %s1206, 24
        %s1208 = scalar_lea.vmem [#allocation4], %s1207
        // Predicated region
        $region73: #{encoder_covariance_forward.1} parent=71 // pred_check
          %p1209 = pneg %p328
        $region74: #{encoder_covariance_forward.1} parent=71 // pred_check_branch
          %1211 = sbr.rel (%p1209) target = $region76
        $region75: #{encoder_covariance_forward.1} parent=71 // pred_region
          %s1212 = smul.u32 3, %s32
          %s1214 = ssub.s32 384, 384
          %1215 = vsyncadd %s1200, %s1214
          %s1216 = smul.addr %s1212, 128
          %s1217 = scalar_lea.hbm %s13, %s1216
          %s1218 = sshll.u32 %s1203, 4
          %s1219 = int_to_ptr.vmem [resolvable:$true] %s1218
          %1224 = dma.vmem_to_hbm [thread:$0]  %s1219, 384, %s1217, %s1200, 128, 128, 8
        $region76: #{encoder_covariance_forward.1} parent=71 // pred_fallthru
          _
        // Predicated region
        $region77: #{encoder_covariance_forward.1} parent=71 // pred_check
          %p1225 = pneg %p354
        $region78: #{encoder_covariance_forward.1} parent=71 // pred_check_branch
          %1227 = sbr.rel (%p1225) target = $region80
        $region79: #{encoder_covariance_forward.1} parent=71 // pred_region
          %s1228 = smul.u32 3, %s32
          %s1230 = ssub.s32 384, 384
          %1231 = vsyncadd %s1205, %s1230
          %s1232 = smul.addr %s1228, 128
          %s1233 = scalar_lea.hbm %s14, %s1232
          %s1234 = sshll.u32 %s1208, 4
          %s1235 = int_to_ptr.vmem [resolvable:$true] %s1234
          %1240 = dma.vmem_to_hbm [thread:$0]  %s1235, 384, %s1233, %s1205, 128, 128, 8
        $region80: #{encoder_covariance_forward.1} parent=71 // pred_fallthru
          _
      $region72: #{encoder_covariance_forward.1} parent=5 // pred_fallthru
        _
      %p1241 = scmp.le.s32.totalorder 2, %s27
      // Predicated region
      $region81: #{encoder_covariance_forward.1} parent=5 // pred_check
        %p1242 = pneg %p1241
      $region82: #{encoder_covariance_forward.1} parent=5 // pred_check_branch
        %1244 = sbr.rel (%p1242) target = $region84
      $region83: #{encoder_covariance_forward.1} parent=5 // pred_region
        %s1245 = ssub.s32 %s27, 2
        // Predicated region
        $region85: #{encoder_covariance_forward.1} parent=83 // pred_check
          %p1246 = pneg %p334
        $region86: #{encoder_covariance_forward.1} parent=83 // pred_check_branch
          %1248 = sbr.rel (%p1246) target = $region88
        $region87: #{encoder_covariance_forward.1} parent=83 // pred_region
          %s1249 = sand.u32 %s319, 1
          %s1250 = scalar_lea.sflag [#allocation3], %s1249
          %s1251 = sand.u32 %s319, 1
          %s1252 = smul.addr %s1251, 24
          %s1253 = scalar_lea.vmem [#allocation2], %s1252
          %1254 = dma.done %s1250, 384
        $region88: #{encoder_covariance_forward.1} parent=83 // pred_fallthru
          _
        // Predicated region
        $region89: #{encoder_covariance_forward.1} parent=83 // pred_check
          %p1255 = pneg %p360
        $region90: #{encoder_covariance_forward.1} parent=83 // pred_check_branch
          %1257 = sbr.rel (%p1255) target = $region92
        $region91: #{encoder_covariance_forward.1} parent=83 // pred_region
          %s1258 = sand.u32 %s345, 1
          %s1259 = scalar_lea.sflag [#allocation5], %s1258
          %s1260 = sand.u32 %s345, 1
          %s1261 = smul.addr %s1260, 24
          %s1262 = scalar_lea.vmem [#allocation4], %s1261
          %1263 = dma.done %s1259, 384
        $region92: #{encoder_covariance_forward.1} parent=83 // pred_fallthru
          _
      $region84: #{encoder_covariance_forward.1} parent=5 // pred_fallthru
        _
    $region6: #{encoder_covariance_forward.1} parent=1 // loop_footer
      %s31 = sadd.s32 1, %s27
    $region7: #{encoder_covariance_forward.1} parent=1 // loop_footer_branch
      %26 = sbr.rel target = $region3
    $region8: #{encoder_covariance_forward.1} parent=1 // loop_exit
      _
    %1264 = vsyncpa [#allocation3], 1
    %s1265 = scalar_lea.sflag [#allocation3], 1
    %1266 = vsyncpa %s1265, 1
    %1267 = vsyncpa [#allocation5], 1
    %s1268 = scalar_lea.sflag [#allocation5], 1
    %1269 = vsyncpa %s1268, 1

</llo_original>
